<compile_context>
chip_gen: v7x
topology: tpu7x:2x2x1
jax: 0.10.0
libtpu: 0.0.40
codegen_flags: <defaults>
</compile_context>

<pallas_src>
import functools

import jax
import jax.numpy as jnp
from jax.experimental import pallas as pl
from jax.experimental.pallas import tpu as pltpu

_SOFTPLUS_THRESHOLD = 20.0


def _round_up(n, m):
    return ((n + m - 1) // m) * m


def _softplus(x):
    # Matches torch.nn.Softplus(beta=1, threshold=20): identity above the
    # threshold, log1p(exp(x)) below.  The jnp.minimum clamp keeps exp finite
    # for the garbage rows of a partial last tile as well.
    t = jnp.asarray(_SOFTPLUS_THRESHOLD, dtype=x.dtype)
    return jnp.where(x > t, x, jnp.log1p(jnp.exp(jnp.minimum(x, t))))


def _cgcnn_fc_kernel(x_ref, w1_ref, b1_ref, w2_ref, b2_ref, o_ref, *, act_dtype):
    # x_ref:  (TB, 64)   f32        batch tile
    # w1_ref: (64, 128)  act_dtype  resident (constant index_map)
    # b1_ref: (1, 128)   f32        resident
    # w2_ref: (1, 128)   f32        fc_out weight as a row, resident
    # b2_ref: (1,)       f32        SMEM scalar
    # o_ref:  (TB, 1)    f32
    h = _softplus(x_ref[...].astype(act_dtype))

    # Layer 1 (64 -> 128) on the MXU, f32 accumulation.  For the f32 path we
    # request HIGHEST precision so the result is spec-exact; the matmul is
    # nanoseconds per tile either way (MXU is not the binding unit).
    precision = jax.lax.Precision.HIGHEST if act_dtype == jnp.float32 else None
    h = jnp.dot(
        h, w1_ref[...],
        preferred_element_type=jnp.float32,
        precision=precision,
    ) + b1_ref[...]

    # Second softplus (optionally bf16 to relieve the EUP on v6e/v7x).
    h = _softplus(h.astype(act_dtype))

    # Layer 2 (128 -> 1): degenerate N=1 matmul -> VPU multiply against the
    # weight row + lane (axis=-1) reduction on the XLU, in f32.
    out = jnp.sum(h.astype(jnp.float32) * w2_ref[...], axis=-1, keepdims=True)
    o_ref[...] = (out + b2_ref[0]).astype(o_ref.dtype)


def crystal_graph_fc(x, w1, b1, w2, b2, *, block_rows=2048, bf16_activations=False):
    """CrystalGraphFc forward: x (B, 64) f32 -> (B, 1) f32.

    w1: (64, 128)  (transpose of torch Linear.weight), b1: (128,),
    w2: (128, 1), b2: (1,)  — all f32.

    bf16_activations=True runs both softplus stages (and the layer-1 MXU
    operands) in bf16: ~1e-3 extra error, roughly halves the EUP-bound
    transcendental time on v6e/v7x.  Leave False on v5e / for exact results.
    """
    B, d_in = x.shape
    d_hid = w1.shape[1]

    # ---- batch-tile selection ----------------------------------------------
    # Large tiles amortize the ~0.35 us fixed per-grid-step cost; an even
    # number of (near-)equal steps keeps the two v7x TensorCores balanced
    # under dimension_semantics=("parallel",) (no-op on v5e/v6e).
    b_pad = max(8, _round_up(B, 8))
    n_steps = max(1, pl.cdiv(b_pad, block_rows))
    if b_pad >= 16:                      # splittable into >= 2 sublane-aligned tiles
        n_steps = max(n_steps, 2)
        if n_steps % 2:
            n_steps += 1                 # even step count -> balanced 2-core split
    tb = _round_up(pl.cdiv(b_pad, n_steps), 8)
    grid = (pl.cdiv(B, tb),)

    act_dtype = jnp.bfloat16 if bf16_activations else jnp.float32

    w1_in = w1.astype(act_dtype)         # MXU operand dtype matches activations
    b1_row = b1.reshape(1, d_hid).astype(jnp.float32)
    w2_row = w2.reshape(1, d_hid).astype(jnp.float32)   # (128,1) -> (1,128) row
    b2_s = b2.reshape(1).astype(jnp.float32)

    kernel = functools.partial(_cgcnn_fc_kernel, act_dtype=act_dtype)

    return pl.pallas_call(
        kernel,
        out_shape=jax.ShapeDtypeStruct((B, 1), jnp.float32),
        grid=grid,
        in_specs=[
            pl.BlockSpec((tb, d_in), lambda i: (i, 0)),       # batch-tiled x
            pl.BlockSpec((d_in, d_hid), lambda i: (0, 0)),    # resident w1
            pl.BlockSpec((1, d_hid), lambda i: (0, 0)),       # resident b1
            pl.BlockSpec((1, d_hid), lambda i: (0, 0)),       # resident w2 row
            pl.BlockSpec(memory_space=pltpu.MemorySpace.SMEM),  # b2 scalar
        ],
        out_specs=pl.BlockSpec((tb, 1), lambda i: (i, 0)),
        compiler_params=pltpu.CompilerParams(
            dimension_semantics=("parallel",),     # shard batch across TCs on v7x
            vmem_limit_bytes=32 * 1024 * 1024,     # headroom over v5e's 16 MiB default
        ),
    )(x, w1_in, b1_row, w2_row, b2_s)


def reference_f32(x, w1, b1, w2, b2):
    """Spec-exact f32 forward matching the PyTorch module (HIGHEST precision
    matmuls so the XLA reference itself is not bf16-truncated on TPU)."""
    h = _softplus(x)
    h = jnp.dot(h, w1, precision=jax.lax.Precision.HIGHEST) + b1
    h = _softplus(h)
    return jnp.dot(h, w2, precision=jax.lax.Precision.HIGHEST) + b2


if __name__ == "__main__":
    key = jax.random.PRNGKey(0)
    k_x, k_w1, k_b1, k_w2, k_b2 = jax.random.split(key, 5)

    # B chosen so the grid has 2 balanced steps (one full + one partial tile).
    B, D_IN, D_HID, D_OUT = 300, 64, 128, 1
    x = jax.random.normal(k_x, (B, D_IN), dtype=jnp.float32)

    # Deterministic synthetic parameters (nn.Linear-style uniform init).
    lim1 = 1.0 / jnp.sqrt(D_IN)
    w1 = jax.random.uniform(k_w1, (D_IN, D_HID), jnp.float32, -lim1, lim1)
    b1 = jax.random.uniform(k_b1, (D_HID,), jnp.float32, -lim1, lim1)
    lim2 = 1.0 / jnp.sqrt(D_HID)
    w2 = jax.random.uniform(k_w2, (D_HID, D_OUT), jnp.float32, -lim2, lim2)
    b2 = jax.random.uniform(k_b2, (D_OUT,), jnp.float32, -lim2, lim2)

    ref = reference_f32(x, w1, b1, w2, b2)

    # Default path: f32 end-to-end, spec-exact (tight tolerance).
    out = jax.block_until_ready(crystal_graph_fc(x, w1, b1, w2, b2))
    assert out.shape == (B, D_OUT)
    assert jnp.allclose(out, ref, atol=1e-4, rtol=1e-4)

    # Opt-in bf16-activation path (EUP relief on v6e/v7x): looser tolerance.
    out_bf16 = jax.block_until_ready(
        crystal_graph_fc(x, w1, b1, w2, b2, bf16_activations=True))
    assert out_bf16.shape == (B, D_OUT)
    assert jnp.allclose(out_bf16, ref, atol=3e-2, rtol=3e-2)

    print("KERNEL_OK")
</pallas_src>

<mosaic_0001>
module attributes {stable_mosaic.version = 11 : i64} {
  func.func @_cgcnn_fc_kernel(%arg0: i32, %arg1: memref<152x64xf32, #tpu.memory_space<vmem>>, %arg2: memref<64x128xf32, #tpu.memory_space<vmem>>, %arg3: memref<1x128xf32, #tpu.memory_space<vmem>>, %arg4: memref<1x128xf32, #tpu.memory_space<vmem>>, %arg5: memref<1xf32, #tpu.memory_space<smem>>, %arg6: memref<152x1xf32, #tpu.memory_space<vmem>>) attributes {dimension_semantics = [#tpu.dimension_semantics<parallel>], iteration_bounds = array<i64: 2>, scalar_prefetch = 0 : i64, scratch_operands = 0 : i64, tpu.core_type = #tpu.core_type<tc>, window_params = [{transform_indices = @transform_0, window_bounds = array<i64: 152, 64>}, {pipeline_mode = #tpu.pipeline_mode<synchronous>, transform_indices = @transform_1, window_bounds = array<i64: 64, 128>}, {pipeline_mode = #tpu.pipeline_mode<synchronous>, transform_indices = @transform_2, window_bounds = array<i64: 1, 128>}, {pipeline_mode = #tpu.pipeline_mode<synchronous>, transform_indices = @transform_3, window_bounds = array<i64: 1, 128>}, {transform_indices = @transform_4, window_bounds = array<i64: 1>}, {transform_indices = @transform_5, window_bounds = array<i64: 152, 1>}]} {
    %c0 = arith.constant 0 : index
    %c0_0 = arith.constant 0 : index
    %0 = vector.load %arg1[%c0, %c0_0] : memref<152x64xf32, #tpu.memory_space<vmem>>, vector<152x64xf32>
    %cst = arith.constant 2.000000e+01 : f32
    %1 = vector.broadcast %cst : f32 to vector<152x64xf32>
    %2 = arith.cmpf ogt, %0, %1 : vector<152x64xf32>
    %cst_1 = arith.constant 2.000000e+01 : f32
    %3 = vector.broadcast %cst_1 : f32 to vector<152x64xf32>
    %4 = arith.minimumf %0, %3 : vector<152x64xf32>
    %5 = math.exp %4 : vector<152x64xf32>
    %6 = math.log1p %5 : vector<152x64xf32>
    %7 = arith.select %2, %0, %6 : vector<152x64xi1>, vector<152x64xf32>
    %c0_2 = arith.constant 0 : index
    %c0_3 = arith.constant 0 : index
    %8 = vector.load %arg2[%c0_2, %c0_3] : memref<64x128xf32, #tpu.memory_space<vmem>>, vector<64x128xf32>
    %cst_4 = arith.constant dense<0.000000e+00> : vector<152x128xf32>
    %9 = tpu.matmul %7, %8, %cst_4 {dimension_numbers = #tpu.dot_dimension_numbers<[1], [0], [0], [1], [0, 0, 1, 1], [], []>, precision = #tpu.contract_precision<fp32>} : vector<152x64xf32>, vector<64x128xf32>, vector<152x128xf32> -> vector<152x128xf32>
    %c0_5 = arith.constant 0 : index
    %c0_6 = arith.constant 0 : index
    %10 = vector.load %arg3[%c0_5, %c0_6] : memref<1x128xf32, #tpu.memory_space<vmem>>, vector<1x128xf32>
    %11 = vector.broadcast %10 : vector<1x128xf32> to vector<152x128xf32>
    %12 = arith.addf %9, %11 : vector<152x128xf32>
    %cst_7 = arith.constant 2.000000e+01 : f32
    %13 = vector.broadcast %cst_7 : f32 to vector<152x128xf32>
    %14 = arith.cmpf ogt, %12, %13 : vector<152x128xf32>
    %cst_8 = arith.constant 2.000000e+01 : f32
    %15 = vector.broadcast %cst_8 : f32 to vector<152x128xf32>
    %16 = arith.minimumf %12, %15 : vector<152x128xf32>
    %17 = math.exp %16 : vector<152x128xf32>
    %18 = math.log1p %17 : vector<152x128xf32>
    %19 = arith.select %14, %12, %18 : vector<152x128xi1>, vector<152x128xf32>
    %c0_9 = arith.constant 0 : index
    %c0_10 = arith.constant 0 : index
    %20 = vector.load %arg4[%c0_9, %c0_10] : memref<1x128xf32, #tpu.memory_space<vmem>>, vector<1x128xf32>
    %21 = vector.broadcast %20 : vector<1x128xf32> to vector<152x128xf32>
    %22 = arith.mulf %19, %21 : vector<152x128xf32>
    %cst_11 = arith.constant dense<0.000000e+00> : vector<152xf32>
    %23 = vector.multi_reduction <add>, %22, %cst_11 [1] : vector<152x128xf32> to vector<152xf32>
    %24 = vector.shape_cast %23 : vector<152xf32> to vector<152x1xf32>
    %c0_12 = arith.constant 0 : index
    %25 = memref.load %arg5[%c0_12] : memref<1xf32, #tpu.memory_space<smem>>
    %26 = vector.broadcast %25 : f32 to vector<152x1xf32>
    %27 = arith.addf %24, %26 : vector<152x1xf32>
    %c0_13 = arith.constant 0 : index
    %c0_14 = arith.constant 0 : index
    %28 = vector.load %arg6[%c0_13, %c0_14] : memref<152x1xf32, #tpu.memory_space<vmem>>, vector<152x1xf32>
    tpu.vector_store %arg6[%c0_13, %c0_14], %27 {strides = array<i32>} : memref<152x1xf32, #tpu.memory_space<vmem>>, vector<152x1xf32>,
    return
  }
  func.func @transform_0(%arg0: i32) -> (i32, i32) {
    %c0_i32 = arith.constant 0 : i32
    %c0_i32_0 = arith.constant 0 : i32
    return %arg0, %c0_i32 : i32, i32
  }
  func.func @transform_1(%arg0: i32) -> (i32, i32) {
    %c0_i32 = arith.constant 0 : i32
    %c0_i32_0 = arith.constant 0 : i32
    %c0_i32_1 = arith.constant 0 : i32
    return %c0_i32, %c0_i32_0 : i32, i32
  }
  func.func @transform_2(%arg0: i32) -> (i32, i32) {
    %c0_i32 = arith.constant 0 : i32
    %c0_i32_0 = arith.constant 0 : i32
    %c0_i32_1 = arith.constant 0 : i32
    return %c0_i32, %c0_i32_0 : i32, i32
  }
  func.func @transform_3(%arg0: i32) -> (i32, i32) {
    %c0_i32 = arith.constant 0 : i32
    %c0_i32_0 = arith.constant 0 : i32
    %c0_i32_1 = arith.constant 0 : i32
    return %c0_i32, %c0_i32_0 : i32, i32
  }
  func.func @transform_4(%arg0: i32) -> i32 {
    %c0_i32 = arith.constant 0 : i32
    %c0_i32_0 = arith.constant 0 : i32
    return %c0_i32 : i32
  }
  func.func @transform_5(%arg0: i32) -> (i32, i32) {
    %c0_i32 = arith.constant 0 : i32
    %c0_i32_0 = arith.constant 0 : i32
    return %arg0, %c0_i32 : i32, i32
  }
}

</mosaic_0001>

<llo_original>
// kernel: tpu_custom_call.1
$region0: #{tpu_custom_call.1}
  #allocation0 [shape = 'u32[]', space=smem, size = 0x4, offset = 0x4, fixed_abs, tag = 'smem constant byte address 0x4 - core index']
  #allocation1 [shape = 'u32[144,128]{1,0:T(1,128)}', space=vmem, size = 0x12000, scoped, tag = 'internal scratch']
  #allocation2 [shape = 'f32[1]{0:T(128)S(6)}', space=smem, size = 0x200, scoped, tag = 'scoped memory for tpu_custom_call.1']
  %s0 = inlined_call_operand.vmem [shape: f32[300,64], index: 0, kind: input, shape index: {}]
  %s1 = inlined_call_operand.vmem [shape: f32[64,128], index: 1, kind: input, shape index: {}]
  %s2 = inlined_call_operand.vmem [shape: f32[1,128], index: 2, kind: input, shape index: {}]
  %s3 = inlined_call_operand.vmem [shape: f32[1,128], index: 3, kind: input, shape index: {}]
  %s4 = inlined_call_operand.<no memory space> [shape: f32[1], index: 4, kind: input, shape index: {}]
  %s5 = inlined_call_operand.vmem [shape: f32[300,1], index: 5, kind: output, shape index: {}]
  %s6 = sld [smem:[#allocation0]]
  $region53: #{tpu_custom_call.1} parent=0
    _
  %s8 = ssub.s32 1, %s6
  %s9 = scalar_select 0, %s8, %s6
  %10 = sst [smem:[#allocation2]] %s4
  loop: start=0, step=1, limit=4
  $region2: #{tpu_custom_call.1} parent=0 // loop_pre_header
    _
  $region3: #{tpu_custom_call.1} parent=0 // loop_header
    %s12 = sphi 0, %s16
    %p13 = scmp.ge.s32.totalorder %s12, 4
    %s22 = sphi 0, %s24
    %s25 = sphi 0, %s22
    %s26 = sphi 0, %s25
    %s42 = sphi 0, %s26
    %s46 = sphi 0, %s46
    %s48 = sphi 0, %s46
    %s49 = sphi 0, %s48
    %s63 = sphi 0, %s49
    %s67 = sphi 0, %s67
    %s69 = sphi 0, %s67
    %s70 = sphi 0, %s69
    %s84 = sphi 0, %s70
    %s88 = sphi 0, %s88
    %s90 = sphi 0, %s88
    %s91 = sphi 0, %s90
    %s105 = sphi 0, %s91
    %s109 = sphi 0, %s109
    %s111 = sphi 0, %s109
    %s112 = sphi 0, %s111
    %s126 = sphi 0, %s112
    %s132 = sphi 0, %s134
    %s135 = sphi 0, %s132
    %s136 = sphi 0, %s135
    %s152 = sphi 0, %s136
  $region4: #{tpu_custom_call.1} parent=0 // loop_header_branch
    %15 = sbr.rel (%p13) target = $region8
  $region5: #{tpu_custom_call.1} parent=0 // loop_body
    %s17 = ssub.s32 %s12, 1
    %s18 = ssub.s32 %s12, 2
    %s19 = sadd.s32 %s12, 1
    %s20 = ssub.s32 %s12, %s19
    %p21 = scmp.eq.s32.totalorder %s20, 0
    %s23 = sadd.s32 %s22, 1
    %s24 = scalar_select %p21, %s22, %s23
    %p27 = pneg %p21
    %p28 = scmp.eq.s32.totalorder %s12, 1
    %p29 = por %p27, %p28
    %p30 = scmp.ne.s32.totalorder %s22, %s25
    %p31 = scmp.eq.s32.totalorder %s12, 0
    %p32 = por %p30, %p31
    %p33 = scmp.ne.s32.totalorder %s22, %s25
    %p34 = scmp.eq.s32.totalorder %s17, 1
    %p35 = por %p33, %p34
    %p36 = scmp.ne.s32.totalorder %s25, %s26
    %p37 = scmp.eq.s32.totalorder %s17, 0
    %p38 = por %p36, %p37
    %p39 = scmp.ne.s32.totalorder %s25, %s26
    %p40 = scmp.eq.s32.totalorder %s18, 1
    %p41 = por %p39, %p40
    %p43 = scmp.ne.s32.totalorder %s26, %s42
    %p44 = scmp.eq.s32.totalorder %s18, 0
    %p45 = por %p43, %p44
    %s47 = sadd.s32 %s46, 1
    %p50 = scmp.eq.s32.totalorder %s12, 1
    %p51 = scmp.ne.s32.totalorder %s46, %s48
    %p52 = scmp.eq.s32.totalorder %s12, 0
    %p53 = por %p51, %p52
    %p54 = scmp.ne.s32.totalorder %s46, %s48
    %p55 = scmp.eq.s32.totalorder %s17, 1
    %p56 = por %p54, %p55
    %p57 = scmp.ne.s32.totalorder %s48, %s49
    %p58 = scmp.eq.s32.totalorder %s17, 0
    %p59 = por %p57, %p58
    %p60 = scmp.ne.s32.totalorder %s48, %s49
    %p61 = scmp.eq.s32.totalorder %s18, 1
    %p62 = por %p60, %p61
    %p64 = scmp.ne.s32.totalorder %s49, %s63
    %p65 = scmp.eq.s32.totalorder %s18, 0
    %p66 = por %p64, %p65
    %s68 = sadd.s32 %s67, 1
    %p71 = scmp.eq.s32.totalorder %s12, 1
    %p72 = scmp.ne.s32.totalorder %s67, %s69
    %p73 = scmp.eq.s32.totalorder %s12, 0
    %p74 = por %p72, %p73
    %p75 = scmp.ne.s32.totalorder %s67, %s69
    %p76 = scmp.eq.s32.totalorder %s17, 1
    %p77 = por %p75, %p76
    %p78 = scmp.ne.s32.totalorder %s69, %s70
    %p79 = scmp.eq.s32.totalorder %s17, 0
    %p80 = por %p78, %p79
    %p81 = scmp.ne.s32.totalorder %s69, %s70
    %p82 = scmp.eq.s32.totalorder %s18, 1
    %p83 = por %p81, %p82
    %p85 = scmp.ne.s32.totalorder %s70, %s84
    %p86 = scmp.eq.s32.totalorder %s18, 0
    %p87 = por %p85, %p86
    %s89 = sadd.s32 %s88, 1
    %p92 = scmp.eq.s32.totalorder %s12, 1
    %p93 = scmp.ne.s32.totalorder %s88, %s90
    %p94 = scmp.eq.s32.totalorder %s12, 0
    %p95 = por %p93, %p94
    %p96 = scmp.ne.s32.totalorder %s88, %s90
    %p97 = scmp.eq.s32.totalorder %s17, 1
    %p98 = por %p96, %p97
    %p99 = scmp.ne.s32.totalorder %s90, %s91
    %p100 = scmp.eq.s32.totalorder %s17, 0
    %p101 = por %p99, %p100
    %p102 = scmp.ne.s32.totalorder %s90, %s91
    %p103 = scmp.eq.s32.totalorder %s18, 1
    %p104 = por %p102, %p103
    %p106 = scmp.ne.s32.totalorder %s91, %s105
    %p107 = scmp.eq.s32.totalorder %s18, 0
    %p108 = por %p106, %p107
    %s110 = sadd.s32 %s109, 1
    %p113 = scmp.eq.s32.totalorder %s12, 1
    %p114 = scmp.ne.s32.totalorder %s109, %s111
    %p115 = scmp.eq.s32.totalorder %s12, 0
    %p116 = por %p114, %p115
    %p117 = scmp.ne.s32.totalorder %s109, %s111
    %p118 = scmp.eq.s32.totalorder %s17, 1
    %p119 = por %p117, %p118
    %p120 = scmp.ne.s32.totalorder %s111, %s112
    %p121 = scmp.eq.s32.totalorder %s17, 0
    %p122 = por %p120, %p121
    %p123 = scmp.ne.s32.totalorder %s111, %s112
    %p124 = scmp.eq.s32.totalorder %s18, 1
    %p125 = por %p123, %p124
    %p127 = scmp.ne.s32.totalorder %s112, %s126
    %p128 = scmp.eq.s32.totalorder %s18, 0
    %p129 = por %p127, %p128
    %s130 = ssub.s32 %s12, %s19
    %p131 = scmp.eq.s32.totalorder %s130, 0
    %s133 = sadd.s32 %s132, 1
    %s134 = scalar_select %p131, %s132, %s133
    %p137 = pneg %p131
    %p138 = scmp.eq.s32.totalorder %s12, 1
    %p139 = por %p137, %p138
    %p140 = scmp.ne.s32.totalorder %s132, %s135
    %p141 = scmp.eq.s32.totalorder %s12, 0
    %p142 = por %p140, %p141
    %p143 = scmp.ne.s32.totalorder %s132, %s135
    %p144 = scmp.eq.s32.totalorder %s17, 1
    %p145 = por %p143, %p144
    %p146 = scmp.ne.s32.totalorder %s135, %s136
    %p147 = scmp.eq.s32.totalorder %s17, 0
    %p148 = por %p146, %p147
    %p149 = scmp.ne.s32.totalorder %s135, %s136
    %p150 = scmp.eq.s32.totalorder %s18, 1
    %p151 = por %p149, %p150
    %p153 = scmp.ne.s32.totalorder %s136, %s152
    %p154 = scmp.eq.s32.totalorder %s18, 0
    %p155 = por %p153, %p154
    %p156 = scmp.le.s32.totalorder 1, %s12
    %p157 = scmp.lt.s32.totalorder %s12, 3
    %p158 = pnand %p156, %p157
    %p159 = pneg %p158
    // Predicated region
    $region9: #{tpu_custom_call.1} parent=5 // pred_check
      _
    $region10: #{tpu_custom_call.1} parent=5 // pred_check_branch
      %161 = sbr.rel (%p158) target = $region12
    $region11: #{tpu_custom_call.1} parent=5 // pred_region
      %s162 = ssub.s32 %s12, 1
      // Predicated region
      $region13: #{tpu_custom_call.1} parent=11 // pred_check
        %p163 = pneg %p59
      $region14: #{tpu_custom_call.1} parent=11 // pred_check_branch
        %165 = sbr.rel (%p163) target = $region16
      $region15: #{tpu_custom_call.1} parent=11 // pred_region
        _
      $region16: #{tpu_custom_call.1} parent=11 // pred_fallthru
        _
      // Predicated region
      $region17: #{tpu_custom_call.1} parent=11 // pred_check
        %p166 = pneg %p80
      $region18: #{tpu_custom_call.1} parent=11 // pred_check_branch
        %168 = sbr.rel (%p166) target = $region20
      $region19: #{tpu_custom_call.1} parent=11 // pred_region
        _
      $region20: #{tpu_custom_call.1} parent=11 // pred_fallthru
        _
      // Predicated region
      $region21: #{tpu_custom_call.1} parent=11 // pred_check
        %p169 = pneg %p101
      $region22: #{tpu_custom_call.1} parent=11 // pred_check_branch
        %171 = sbr.rel (%p169) target = $region24
      $region23: #{tpu_custom_call.1} parent=11 // pred_region
        _
      $region24: #{tpu_custom_call.1} parent=11 // pred_fallthru
        _
      // Predicated region
      $region25: #{tpu_custom_call.1} parent=11 // pred_check
        %p172 = pneg %p122
      $region26: #{tpu_custom_call.1} parent=11 // pred_check_branch
        %174 = sbr.rel (%p172) target = $region28
      $region27: #{tpu_custom_call.1} parent=11 // pred_region
        _
      $region28: #{tpu_custom_call.1} parent=11 // pred_fallthru
        _
    $region12: #{tpu_custom_call.1} parent=5 // pred_fallthru
      _
    %p175 = scmp.lt.s32.totalorder %s12, 2
    // Predicated region
    $region29: #{tpu_custom_call.1} parent=5 // pred_check
      %p176 = pneg %p175
    $region30: #{tpu_custom_call.1} parent=5 // pred_check_branch
      %178 = sbr.rel (%p176) target = $region32
    $region31: #{tpu_custom_call.1} parent=5 // pred_region
      // Predicated region
      $region33: #{tpu_custom_call.1} parent=31 // pred_check
        %p179 = pneg %p32
      $region34: #{tpu_custom_call.1} parent=31 // pred_check_branch
        %181 = sbr.rel (%p179) target = $region36
      $region35: #{tpu_custom_call.1} parent=31 // pred_region
        %s182 = smul.u32 19, %s12
        %p183 = scmp.lt.s32.totalorder %s182, 37
        %s184 = scalar_select %p183, %s182, 37
        %s185 = smul.addr %s184, 8
        %s186 = scalar_lea.vmem %s0, %s185
        %s187 = smul.u32 19, %s12
      $region36: #{tpu_custom_call.1} parent=31 // pred_fallthru
        _
    $region32: #{tpu_custom_call.1} parent=5 // pred_fallthru
      _
    %p188 = scmp.le.s32.totalorder 1, %s12
    %p189 = scmp.lt.s32.totalorder %s12, 3
    %p190 = pnand %p188, %p189
    %p191 = pneg %p190
    // Predicated region
    $region37: #{tpu_custom_call.1} parent=5 // pred_check
      _
    $region38: #{tpu_custom_call.1} parent=5 // pred_check_branch
      %193 = sbr.rel (%p190) target = $region40
    $region39: #{tpu_custom_call.1} parent=5 // pred_region
      %s194 = ssub.s32 %s12, 1
      %s195 = smul.u32 19, %s17
      %p196 = scmp.lt.s32.totalorder %s195, 37
      %s197 = scalar_select %p196, %s195, 37
      %s198 = smul.addr %s197, 8
      %s199 = scalar_lea.vmem %s0, %s198
      %p200 = pneg %p38
      %p201 = pneg %p35
      %p202 = pneg %p59
      %p203 = pneg %p56
      %p204 = pneg %p80
      %p205 = pneg %p77
      %p206 = pneg %p101
      %p207 = pneg %p98
      %p208 = pneg %p122
      %p209 = pneg %p119
      %p210 = pneg %p148
      %p211 = pneg %p145
      %s212 = smul.u32 19, %s17
      %p213 = scmp.lt.s32.totalorder %s212, 37
      %s214 = scalar_select %p213, %s212, 37
      %s215 = smul.addr %s214, 8
      %s216 = scalar_lea.vmem %s5, %s215
      %s217 = smul.u32 19, %s17
      %p218 = scmp.lt.s32.totalorder %s217, 37
      %s219 = scalar_select %p218, %s217, 37
      %s220 = smul.addr %s219, 8
      %s221 = scalar_lea.vmem %s0, %s220
      %s222 = smul.u32 19, %s17
      %s223 = smul.u32 19, %s17
      %p224 = scmp.lt.s32.totalorder %s223, 37
      %s225 = scalar_select %p224, %s223, 37
      %s226 = smul.addr %s225, 8
      %s227 = scalar_lea.vmem %s5, %s226
      %s228 = smul.u32 19, %s17
      %v229 = vld [vmem:[%s221] sm:$0xff]
      %v230 = vld [vmem:[%s221 + $0x8] sm:$0xff]
      %v231 = vld [vmem:[%s221 + $0x10] sm:$0xff]
      %v232 = vld [vmem:[%s221 + $0x18] sm:$0xff]
      %v233 = vld [vmem:[%s221 + $0x20] sm:$0xff]
      %v234 = vld [vmem:[%s221 + $0x28] sm:$0xff]
      %v235 = vld [vmem:[%s221 + $0x30] sm:$0xff]
      %v236 = vld [vmem:[%s221 + $0x38] sm:$0xff]
      %v237 = vld [vmem:[%s221 + $0x40] sm:$0xff]
      %v238 = vld [vmem:[%s221 + $0x48] sm:$0xff]
      %v239 = vld [vmem:[%s221 + $0x50] sm:$0xff]
      %v240 = vld [vmem:[%s221 + $0x58] sm:$0xff]
      %v241 = vld [vmem:[%s221 + $0x60] sm:$0xff]
      %v242 = vld [vmem:[%s221 + $0x68] sm:$0xff]
      %v243 = vld [vmem:[%s221 + $0x70] sm:$0xff]
      %v244 = vld [vmem:[%s221 + $0x78] sm:$0xff]
      %v245 = vld [vmem:[%s221 + $0x80] sm:$0xff]
      %v246 = vld [vmem:[%s221 + $0x88] sm:$0xff]
      %v247 = vld [vmem:[%s221 + $0x90] sm:$0xff]
      %vm248 = vcmp.gt.f32.partialorder %v229, 20.0
      %vm249 = vcmp.gt.f32.partialorder %v230, 20.0
      %vm250 = vcmp.gt.f32.partialorder %v231, 20.0
      %vm251 = vcmp.gt.f32.partialorder %v232, 20.0
      %vm252 = vcmp.gt.f32.partialorder %v233, 20.0
      %vm253 = vcmp.gt.f32.partialorder %v234, 20.0
      %vm254 = vcmp.gt.f32.partialorder %v235, 20.0
      %vm255 = vcmp.gt.f32.partialorder %v236, 20.0
      %vm256 = vcmp.gt.f32.partialorder %v237, 20.0
      %vm257 = vcmp.gt.f32.partialorder %v238, 20.0
      %vm258 = vcmp.gt.f32.partialorder %v239, 20.0
      %vm259 = vcmp.gt.f32.partialorder %v240, 20.0
      %vm260 = vcmp.gt.f32.partialorder %v241, 20.0
      %vm261 = vcmp.gt.f32.partialorder %v242, 20.0
      %vm262 = vcmp.gt.f32.partialorder %v243, 20.0
      %vm263 = vcmp.gt.f32.partialorder %v244, 20.0
      %vm264 = vcmp.gt.f32.partialorder %v245, 20.0
      %vm265 = vcmp.gt.f32.partialorder %v246, 20.0
      %vm266 = vcmp.gt.f32.partialorder %v247, 20.0
      %v267 = vmin.f32 %v229, 20.0
      %v268 = vmin.f32 %v230, 20.0
      %v269 = vmin.f32 %v231, 20.0
      %v270 = vmin.f32 %v232, 20.0
      %v271 = vmin.f32 %v233, 20.0
      %v272 = vmin.f32 %v234, 20.0
      %v273 = vmin.f32 %v235, 20.0
      %v274 = vmin.f32 %v236, 20.0
      %v275 = vmin.f32 %v237, 20.0
      %v276 = vmin.f32 %v238, 20.0
      %v277 = vmin.f32 %v239, 20.0
      %v278 = vmin.f32 %v240, 20.0
      %v279 = vmin.f32 %v241, 20.0
      %v280 = vmin.f32 %v242, 20.0
      %v281 = vmin.f32 %v243, 20.0
      %v282 = vmin.f32 %v244, 20.0
      %v283 = vmin.f32 %v245, 20.0
      %v284 = vmin.f32 %v246, 20.0
      %v285 = vmin.f32 %v247, 20.0
      %v286 = vmul.f32 %v267, 1.442695
      %v287 = vpow.pop %v286
      %v288 = vmul.f32 %v268, 1.442695
      %v289 = vpow.pop %v288
      %v290 = vmul.f32 %v269, 1.442695
      %v291 = vpow.pop %v290
      %v292 = vmul.f32 %v270, 1.442695
      %v293 = vpow.pop %v292
      %v294 = vmul.f32 %v271, 1.442695
      %v295 = vpow.pop %v294
      %v296 = vmul.f32 %v272, 1.442695
      %v297 = vpow.pop %v296
      %v298 = vmul.f32 %v273, 1.442695
      %v299 = vpow.pop %v298
      %v300 = vmul.f32 %v274, 1.442695
      %v301 = vpow.pop %v300
      %v302 = vmul.f32 %v275, 1.442695
      %v303 = vpow.pop %v302
      %v304 = vmul.f32 %v276, 1.442695
      %v305 = vpow.pop %v304
      %v306 = vmul.f32 %v277, 1.442695
      %v307 = vpow.pop %v306
      %v308 = vmul.f32 %v278, 1.442695
      %v309 = vpow.pop %v308
      %v310 = vmul.f32 %v279, 1.442695
      %v311 = vpow.pop %v310
      %v312 = vmul.f32 %v280, 1.442695
      %v313 = vpow.pop %v312
      %v314 = vmul.f32 %v281, 1.442695
      %v315 = vpow.pop %v314
      %v316 = vmul.f32 %v282, 1.442695
      %v317 = vpow.pop %v316
      %v318 = vmul.f32 %v283, 1.442695
      %v319 = vpow.pop %v318
      %v320 = vmul.f32 %v284, 1.442695
      %v321 = vpow.pop %v320
      %v322 = vmul.f32 %v285, 1.442695
      %v323 = vpow.pop %v322
      %v324 = vadd.f32 %v287, 1.0
      %v325 = vlog2.pop %v324
      %v326 = vmul.f32 %v325, 0.6931472
      %v327 = vmul.f32 -0.5, %v287
      %v328 = vadd.f32 %v327, 1.0
      %v329 = vmul.f32 %v328, %v287
      %v330 = vand.u32 2147483647, %v287
      %vm331 = vcmp.lt.f32.partialorder %v330, 0.0004427343
      %v332 = vsel %vm331, %v329, %v326
      %v333 = vadd.f32 %v289, 1.0
      %v334 = vlog2.pop %v333
      %v335 = vmul.f32 %v334, 0.6931472
      %v336 = vmul.f32 -0.5, %v289
      %v337 = vadd.f32 %v336, 1.0
      %v338 = vmul.f32 %v337, %v289
      %v339 = vand.u32 2147483647, %v289
      %vm340 = vcmp.lt.f32.partialorder %v339, 0.0004427343
      %v341 = vsel %vm340, %v338, %v335
      %v342 = vadd.f32 %v291, 1.0
      %v343 = vlog2.pop %v342
      %v344 = vmul.f32 %v343, 0.6931472
      %v345 = vmul.f32 -0.5, %v291
      %v346 = vadd.f32 %v345, 1.0
      %v347 = vmul.f32 %v346, %v291
      %v348 = vand.u32 2147483647, %v291
      %vm349 = vcmp.lt.f32.partialorder %v348, 0.0004427343
      %v350 = vsel %vm349, %v347, %v344
      %v351 = vadd.f32 %v293, 1.0
      %v352 = vlog2.pop %v351
      %v353 = vmul.f32 %v352, 0.6931472
      %v354 = vmul.f32 -0.5, %v293
      %v355 = vadd.f32 %v354, 1.0
      %v356 = vmul.f32 %v355, %v293
      %v357 = vand.u32 2147483647, %v293
      %vm358 = vcmp.lt.f32.partialorder %v357, 0.0004427343
      %v359 = vsel %vm358, %v356, %v353
      %v360 = vadd.f32 %v295, 1.0
      %v361 = vlog2.pop %v360
      %v362 = vmul.f32 %v361, 0.6931472
      %v363 = vmul.f32 -0.5, %v295
      %v364 = vadd.f32 %v363, 1.0
      %v365 = vmul.f32 %v364, %v295
      %v366 = vand.u32 2147483647, %v295
      %vm367 = vcmp.lt.f32.partialorder %v366, 0.0004427343
      %v368 = vsel %vm367, %v365, %v362
      %v369 = vadd.f32 %v297, 1.0
      %v370 = vlog2.pop %v369
      %v371 = vmul.f32 %v370, 0.6931472
      %v372 = vmul.f32 -0.5, %v297
      %v373 = vadd.f32 %v372, 1.0
      %v374 = vmul.f32 %v373, %v297
      %v375 = vand.u32 2147483647, %v297
      %vm376 = vcmp.lt.f32.partialorder %v375, 0.0004427343
      %v377 = vsel %vm376, %v374, %v371
      %v378 = vadd.f32 %v299, 1.0
      %v379 = vlog2.pop %v378
      %v380 = vmul.f32 %v379, 0.6931472
      %v381 = vmul.f32 -0.5, %v299
      %v382 = vadd.f32 %v381, 1.0
      %v383 = vmul.f32 %v382, %v299
      %v384 = vand.u32 2147483647, %v299
      %vm385 = vcmp.lt.f32.partialorder %v384, 0.0004427343
      %v386 = vsel %vm385, %v383, %v380
      %v387 = vadd.f32 %v301, 1.0
      %v388 = vlog2.pop %v387
      %v389 = vmul.f32 %v388, 0.6931472
      %v390 = vmul.f32 -0.5, %v301
      %v391 = vadd.f32 %v390, 1.0
      %v392 = vmul.f32 %v391, %v301
      %v393 = vand.u32 2147483647, %v301
      %vm394 = vcmp.lt.f32.partialorder %v393, 0.0004427343
      %v395 = vsel %vm394, %v392, %v389
      %v396 = vadd.f32 %v303, 1.0
      %v397 = vlog2.pop %v396
      %v398 = vmul.f32 %v397, 0.6931472
      %v399 = vmul.f32 -0.5, %v303
      %v400 = vadd.f32 %v399, 1.0
      %v401 = vmul.f32 %v400, %v303
      %v402 = vand.u32 2147483647, %v303
      %vm403 = vcmp.lt.f32.partialorder %v402, 0.0004427343
      %v404 = vsel %vm403, %v401, %v398
      %v405 = vadd.f32 %v305, 1.0
      %v406 = vlog2.pop %v405
      %v407 = vmul.f32 %v406, 0.6931472
      %v408 = vmul.f32 -0.5, %v305
      %v409 = vadd.f32 %v408, 1.0
      %v410 = vmul.f32 %v409, %v305
      %v411 = vand.u32 2147483647, %v305
      %vm412 = vcmp.lt.f32.partialorder %v411, 0.0004427343
      %v413 = vsel %vm412, %v410, %v407
      %v414 = vadd.f32 %v307, 1.0
      %v415 = vlog2.pop %v414
      %v416 = vmul.f32 %v415, 0.6931472
      %v417 = vmul.f32 -0.5, %v307
      %v418 = vadd.f32 %v417, 1.0
      %v419 = vmul.f32 %v418, %v307
      %v420 = vand.u32 2147483647, %v307
      %vm421 = vcmp.lt.f32.partialorder %v420, 0.0004427343
      %v422 = vsel %vm421, %v419, %v416
      %v423 = vadd.f32 %v309, 1.0
      %v424 = vlog2.pop %v423
      %v425 = vmul.f32 %v424, 0.6931472
      %v426 = vmul.f32 -0.5, %v309
      %v427 = vadd.f32 %v426, 1.0
      %v428 = vmul.f32 %v427, %v309
      %v429 = vand.u32 2147483647, %v309
      %vm430 = vcmp.lt.f32.partialorder %v429, 0.0004427343
      %v431 = vsel %vm430, %v428, %v425
      %v432 = vadd.f32 %v311, 1.0
      %v433 = vlog2.pop %v432
      %v434 = vmul.f32 %v433, 0.6931472
      %v435 = vmul.f32 -0.5, %v311
      %v436 = vadd.f32 %v435, 1.0
      %v437 = vmul.f32 %v436, %v311
      %v438 = vand.u32 2147483647, %v311
      %vm439 = vcmp.lt.f32.partialorder %v438, 0.0004427343
      %v440 = vsel %vm439, %v437, %v434
      %v441 = vadd.f32 %v313, 1.0
      %v442 = vlog2.pop %v441
      %v443 = vmul.f32 %v442, 0.6931472
      %v444 = vmul.f32 -0.5, %v313
      %v445 = vadd.f32 %v444, 1.0
      %v446 = vmul.f32 %v445, %v313
      %v447 = vand.u32 2147483647, %v313
      %vm448 = vcmp.lt.f32.partialorder %v447, 0.0004427343
      %v449 = vsel %vm448, %v446, %v443
      %v450 = vadd.f32 %v315, 1.0
      %v451 = vlog2.pop %v450
      %v452 = vmul.f32 %v451, 0.6931472
      %v453 = vmul.f32 -0.5, %v315
      %v454 = vadd.f32 %v453, 1.0
      %v455 = vmul.f32 %v454, %v315
      %v456 = vand.u32 2147483647, %v315
      %vm457 = vcmp.lt.f32.partialorder %v456, 0.0004427343
      %v458 = vsel %vm457, %v455, %v452
      %v459 = vadd.f32 %v317, 1.0
      %v460 = vlog2.pop %v459
      %v461 = vmul.f32 %v460, 0.6931472
      %v462 = vmul.f32 -0.5, %v317
      %v463 = vadd.f32 %v462, 1.0
      %v464 = vmul.f32 %v463, %v317
      %v465 = vand.u32 2147483647, %v317
      %vm466 = vcmp.lt.f32.partialorder %v465, 0.0004427343
      %v467 = vsel %vm466, %v464, %v461
      %v468 = vadd.f32 %v319, 1.0
      %v469 = vlog2.pop %v468
      %v470 = vmul.f32 %v469, 0.6931472
      %v471 = vmul.f32 -0.5, %v319
      %v472 = vadd.f32 %v471, 1.0
      %v473 = vmul.f32 %v472, %v319
      %v474 = vand.u32 2147483647, %v319
      %vm475 = vcmp.lt.f32.partialorder %v474, 0.0004427343
      %v476 = vsel %vm475, %v473, %v470
      %v477 = vadd.f32 %v321, 1.0
      %v478 = vlog2.pop %v477
      %v479 = vmul.f32 %v478, 0.6931472
      %v480 = vmul.f32 -0.5, %v321
      %v481 = vadd.f32 %v480, 1.0
      %v482 = vmul.f32 %v481, %v321
      %v483 = vand.u32 2147483647, %v321
      %vm484 = vcmp.lt.f32.partialorder %v483, 0.0004427343
      %v485 = vsel %vm484, %v482, %v479
      %v486 = vadd.f32 %v323, 1.0
      %v487 = vlog2.pop %v486
      %v488 = vmul.f32 %v487, 0.6931472
      %v489 = vmul.f32 -0.5, %v323
      %v490 = vadd.f32 %v489, 1.0
      %v491 = vmul.f32 %v490, %v323
      %v492 = vand.u32 2147483647, %v323
      %vm493 = vcmp.lt.f32.partialorder %v492, 0.0004427343
      %v494 = vsel %vm493, %v491, %v488
      %v495 = vsel %vm248, %v229, %v332
      %v496 = vsel %vm249, %v230, %v341
      %v497 = vsel %vm250, %v231, %v350
      %v498 = vsel %vm251, %v232, %v359
      %v499 = vsel %vm252, %v233, %v368
      %v500 = vsel %vm253, %v234, %v377
      %v501 = vsel %vm254, %v235, %v386
      %v502 = vsel %vm255, %v236, %v395
      %v503 = vsel %vm256, %v237, %v404
      %v504 = vsel %vm257, %v238, %v413
      %v505 = vsel %vm258, %v239, %v422
      %v506 = vsel %vm259, %v240, %v431
      %v507 = vsel %vm260, %v241, %v440
      %v508 = vsel %vm261, %v242, %v449
      %v509 = vsel %vm262, %v243, %v458
      %v510 = vsel %vm263, %v244, %v467
      %v511 = vsel %vm264, %v245, %v476
      %v512 = vsel %vm265, %v246, %v485
      %v513 = vsel %vm266, %v247, %v494
      %v514 = vld [vmem:[%s1] sm:$0xff]
      %v515 = vld [vmem:[%s1 + $0x8] sm:$0xff]
      %v516 = vld [vmem:[%s1 + $0x10] sm:$0xff]
      %v517 = vld [vmem:[%s1 + $0x18] sm:$0xff]
      %v518 = vld [vmem:[%s1 + $0x20] sm:$0xff]
      %v519 = vld [vmem:[%s1 + $0x28] sm:$0xff]
      %v520 = vld [vmem:[%s1 + $0x30] sm:$0xff]
      %v521 = vld [vmem:[%s1 + $0x38] sm:$0xff]
      %v522 = vld [vmem:[%s2] sm:$0x1]
      %v524 = vlaneseq
      %v525 = vshrl.u32 %v524, 7
      %v526 = vsub.s32 0, %v525
      %v527 = vrot.slane %v522, %v526
      %vm529 = vcmask 523264
      %v531 = vsel %vm529, %v495, 0
      %v534 = vsel %vm529, %v496, 0
      %v537 = vsel %vm529, %v497, 0
      %v540 = vsel %vm529, %v498, 0
      %v543 = vsel %vm529, %v499, 0
      %v546 = vsel %vm529, %v500, 0
      %v549 = vsel %vm529, %v501, 0
      %v552 = vsel %vm529, %v502, 0
      %v555 = vsel %vm529, %v503, 0
      %v558 = vsel %vm529, %v504, 0
      %v561 = vsel %vm529, %v505, 0
      %v564 = vsel %vm529, %v506, 0
      %v567 = vsel %vm529, %v507, 0
      %v570 = vsel %vm529, %v508, 0
      %v573 = vsel %vm529, %v509, 0
      %v576 = vsel %vm529, %v510, 0
      %v579 = vsel %vm529, %v511, 0
      %v582 = vsel %vm529, %v512, 0
      %v585 = vsel %vm529, %v513, 0
      %587 = vmatprep.subr.mxu0 0.0
      %v588 = vand.u32 %v514, 4294901760
      %589 = vmatpush1.msra.mxu0 %v588
      %590 = vmatprep.subr.mxu0 0.0
      %v591 = vand.u32 %v515, 4294901760
      %592 = vmatpush1.msra.mxu0 %v591
      %593 = vmatprep.subr.mxu0 0.0
      %v594 = vand.u32 %v516, 4294901760
      %595 = vmatpush1.msra.mxu0 %v594
      %596 = vmatprep.subr.mxu0 0.0
      %v597 = vand.u32 %v517, 4294901760
      %598 = vmatpush1.msra.mxu0 %v597
      %599 = vmatprep.subr.mxu0 0.0
      %v600 = vand.u32 %v518, 4294901760
      %601 = vmatpush1.msra.mxu0 %v600
      %602 = vmatprep.subr.mxu0 0.0
      %v603 = vand.u32 %v519, 4294901760
      %604 = vmatpush1.msra.mxu0 %v603
      %605 = vmatprep.subr.mxu0 0.0
      %v606 = vand.u32 %v520, 4294901760
      %607 = vmatpush1.msra.mxu0 %v606
      %608 = vmatprep.subr.mxu0 0.0
      %v609 = vand.u32 %v521, 4294901760
      %610 = vmatpush1.msra.mxu0 %v609
      %611 = vmatprep.subr.mxu0 0.0
      %612 = vmatpush1.msra.mxu0 0.0
      %613 = vmatprep.subr.mxu0 0.0
      %614 = vmatpush1.msra.mxu0 0.0
      %615 = vmatprep.subr.mxu0 0.0
      %616 = vmatpush1.msra.mxu0 0.0
      %617 = vmatprep.subr.mxu0 0.0
      %618 = vmatpush1.msra.mxu0 0.0
      %619 = vmatprep.subr.mxu0 0.0
      %620 = vmatpush1.msra.mxu0 0.0
      %621 = vmatprep.subr.mxu0 0.0
      %622 = vmatpush1.msra.mxu0 0.0
      %623 = vmatprep.subr.mxu0 0.0
      %624 = vmatpush1.msra.mxu0 0.0
      %625 = vmatprep.subr.mxu0 0.0
      %626 = vmatpush1.msra.mxu0 0.0
      %627 = vmatprep.subr.mxu0 0.0
      %628 = vmatpush1.msra.mxu0 0.0
      %629 = vmatprep.subr.mxu0 0.0
      %630 = vmatpush1.msra.mxu0 0.0
      %631 = vmatprep.subr.mxu0 0.0
      %632 = vmatpush1.msra.mxu0 0.0
      %633 = vmatprep.subr.mxu0 0.0
      %634 = vmatpush1.msra.mxu0 0.0
      %635 = vmatprep.subr.mxu0 0.0
      %636 = vmatpush1.msra.mxu0 0.0
      %637 = vmatprep.subr.mxu0 0.0
      %638 = vmatpush1.msra.mxu0 0.0
      %639 = vmatprep.subr.mxu0 0.0
      %640 = vmatpush1.msra.mxu0 0.0
      %641 = vmatprep.subr.mxu0 0.0
      %642 = vmatpush1.msra.mxu0 0.0
      %643 = vmatprep.subr.mxu0 0.0
      %644 = vmatpush1.msra.mxu0 0.0
      %645 = vmatprep.subr.mxu0 0.0
      %646 = vmatpush1.msra.mxu0 0.0
      %647 = vmatprep.subr.mxu0 0.0
      %648 = vmatpush1.msra.mxu0 0.0
      %649 = vmatprep.subr.mxu0 0.0
      %650 = vmatpush1.msra.mxu0 0.0
      %651 = vmatprep.subr.mxu0 0.0
      %652 = vmatpush1.msra.mxu0 0.0
      %653 = vmatprep.subr.mxu0 0.0
      %654 = vmatpush1.msra.mxu0 0.0
      %655 = vmatprep.subr.mxu0 0.0
      %656 = vmatpush1.msra.mxu0 0.0
      %657 = vmatprep.subr.mxu0 0.0
      %658 = vmatpush1.msra.mxu0 0.0
      %659 = vmatprep.mubr.f32.mxu0 0.0
      %v660 = vand.u32 %v531, 4294901760
      %v661 = vsub.f32 %v531, %v660
      %v662 = vand.u32 %v661, 4294901760
      %v663 = vsub.f32 %v661, %v662
      %v664 = vand.u32 %v663, 4294901760
      %665 = vmatmul.mubr.f32.gmra.mrb[0].mxu0 %v664
      %v666 = vpop.f32.mrb[0].mxu0
      %v667 = vadd.f32 %v527, %v666
      %v668 = vpop.f32.mrb[0].mxu0
      %669 = vmatprep.mubr.f32.mxu0 0.0
      %v670 = vand.u32 %v534, 4294901760
      %v671 = vsub.f32 %v534, %v670
      %v672 = vand.u32 %v671, 4294901760
      %v673 = vsub.f32 %v671, %v672
      %v674 = vand.u32 %v673, 4294901760
      %675 = vmatmul.mubr.f32.gmra.mrb[0].mxu0 %v674
      %v676 = vpop.f32.mrb[0].mxu0
      %v677 = vadd.f32 %v527, %v676
      %v678 = vpop.f32.mrb[0].mxu0
      %679 = vmatprep.mubr.f32.mxu0 0.0
      %v680 = vand.u32 %v537, 4294901760
      %v681 = vsub.f32 %v537, %v680
      %v682 = vand.u32 %v681, 4294901760
      %v683 = vsub.f32 %v681, %v682
      %v684 = vand.u32 %v683, 4294901760
      %685 = vmatmul.mubr.f32.gmra.mrb[0].mxu0 %v684
      %v686 = vpop.f32.mrb[0].mxu0
      %v687 = vadd.f32 %v527, %v686
      %v688 = vpop.f32.mrb[0].mxu0
      %689 = vmatprep.mubr.f32.mxu0 0.0
      %v690 = vand.u32 %v540, 4294901760
      %v691 = vsub.f32 %v540, %v690
      %v692 = vand.u32 %v691, 4294901760
      %v693 = vsub.f32 %v691, %v692
      %v694 = vand.u32 %v693, 4294901760
      %695 = vmatmul.mubr.f32.gmra.mrb[0].mxu0 %v694
      %v696 = vpop.f32.mrb[0].mxu0
      %v697 = vadd.f32 %v527, %v696
      %v698 = vpop.f32.mrb[0].mxu0
      %699 = vmatprep.mubr.f32.mxu0 0.0
      %v700 = vand.u32 %v543, 4294901760
      %v701 = vsub.f32 %v543, %v700
      %v702 = vand.u32 %v701, 4294901760
      %v703 = vsub.f32 %v701, %v702
      %v704 = vand.u32 %v703, 4294901760
      %705 = vmatmul.mubr.f32.gmra.mrb[0].mxu0 %v704
      %v706 = vpop.f32.mrb[0].mxu0
      %v707 = vadd.f32 %v527, %v706
      %v708 = vpop.f32.mrb[0].mxu0
      %709 = vmatprep.mubr.f32.mxu0 0.0
      %v710 = vand.u32 %v546, 4294901760
      %v711 = vsub.f32 %v546, %v710
      %v712 = vand.u32 %v711, 4294901760
      %v713 = vsub.f32 %v711, %v712
      %v714 = vand.u32 %v713, 4294901760
      %715 = vmatmul.mubr.f32.gmra.mrb[0].mxu0 %v714
      %v716 = vpop.f32.mrb[0].mxu0
      %v717 = vadd.f32 %v527, %v716
      %v718 = vpop.f32.mrb[0].mxu0
      %719 = vmatprep.mubr.f32.mxu0 0.0
      %v720 = vand.u32 %v549, 4294901760
      %v721 = vsub.f32 %v549, %v720
      %v722 = vand.u32 %v721, 4294901760
      %v723 = vsub.f32 %v721, %v722
      %v724 = vand.u32 %v723, 4294901760
      %725 = vmatmul.mubr.f32.gmra.mrb[0].mxu0 %v724
      %v726 = vpop.f32.mrb[0].mxu0
      %v727 = vadd.f32 %v527, %v726
      %v728 = vpop.f32.mrb[0].mxu0
      %729 = vmatprep.mubr.f32.mxu0 0.0
      %v730 = vand.u32 %v552, 4294901760
      %v731 = vsub.f32 %v552, %v730
      %v732 = vand.u32 %v731, 4294901760
      %v733 = vsub.f32 %v731, %v732
      %v734 = vand.u32 %v733, 4294901760
      %735 = vmatmul.mubr.f32.gmra.mrb[0].mxu0 %v734
      %v736 = vpop.f32.mrb[0].mxu0
      %v737 = vadd.f32 %v527, %v736
      %v738 = vpop.f32.mrb[0].mxu0
      %739 = vmatprep.mubr.f32.mxu0 0.0
      %v740 = vand.u32 %v555, 4294901760
      %v741 = vsub.f32 %v555, %v740
      %v742 = vand.u32 %v741, 4294901760
      %v743 = vsub.f32 %v741, %v742
      %v744 = vand.u32 %v743, 4294901760
      %745 = vmatmul.mubr.f32.gmra.mrb[0].mxu0 %v744
      %v746 = vpop.f32.mrb[0].mxu0
      %v747 = vadd.f32 %v527, %v746
      %v748 = vpop.f32.mrb[0].mxu0
      %749 = vmatprep.mubr.f32.mxu0 0.0
      %v750 = vand.u32 %v558, 4294901760
      %v751 = vsub.f32 %v558, %v750
      %v752 = vand.u32 %v751, 4294901760
      %v753 = vsub.f32 %v751, %v752
      %v754 = vand.u32 %v753, 4294901760
      %755 = vmatmul.mubr.f32.gmra.mrb[0].mxu0 %v754
      %v756 = vpop.f32.mrb[0].mxu0
      %v757 = vadd.f32 %v527, %v756
      %v758 = vpop.f32.mrb[0].mxu0
      %759 = vmatprep.mubr.f32.mxu0 0.0
      %v760 = vand.u32 %v561, 4294901760
      %v761 = vsub.f32 %v561, %v760
      %v762 = vand.u32 %v761, 4294901760
      %v763 = vsub.f32 %v761, %v762
      %v764 = vand.u32 %v763, 4294901760
      %765 = vmatmul.mubr.f32.gmra.mrb[0].mxu0 %v764
      %v766 = vpop.f32.mrb[0].mxu0
      %v767 = vadd.f32 %v527, %v766
      %v768 = vpop.f32.mrb[0].mxu0
      %769 = vmatprep.mubr.f32.mxu0 0.0
      %v770 = vand.u32 %v564, 4294901760
      %v771 = vsub.f32 %v564, %v770
      %v772 = vand.u32 %v771, 4294901760
      %v773 = vsub.f32 %v771, %v772
      %v774 = vand.u32 %v773, 4294901760
      %775 = vmatmul.mubr.f32.gmra.mrb[0].mxu0 %v774
      %v776 = vpop.f32.mrb[0].mxu0
      %v777 = vadd.f32 %v527, %v776
      %v778 = vpop.f32.mrb[0].mxu0
      %779 = vmatprep.mubr.f32.mxu0 0.0
      %v780 = vand.u32 %v567, 4294901760
      %v781 = vsub.f32 %v567, %v780
      %v782 = vand.u32 %v781, 4294901760
      %v783 = vsub.f32 %v781, %v782
      %v784 = vand.u32 %v783, 4294901760
      %785 = vmatmul.mubr.f32.gmra.mrb[0].mxu0 %v784
      %v786 = vpop.f32.mrb[0].mxu0
      %v787 = vadd.f32 %v527, %v786
      %v788 = vpop.f32.mrb[0].mxu0
      %789 = vmatprep.mubr.f32.mxu0 0.0
      %v790 = vand.u32 %v570, 4294901760
      %v791 = vsub.f32 %v570, %v790
      %v792 = vand.u32 %v791, 4294901760
      %v793 = vsub.f32 %v791, %v792
      %v794 = vand.u32 %v793, 4294901760
      %795 = vmatmul.mubr.f32.gmra.mrb[0].mxu0 %v794
      %v796 = vpop.f32.mrb[0].mxu0
      %v797 = vadd.f32 %v527, %v796
      %v798 = vpop.f32.mrb[0].mxu0
      %799 = vmatprep.mubr.f32.mxu0 0.0
      %v800 = vand.u32 %v573, 4294901760
      %v801 = vsub.f32 %v573, %v800
      %v802 = vand.u32 %v801, 4294901760
      %v803 = vsub.f32 %v801, %v802
      %v804 = vand.u32 %v803, 4294901760
      %805 = vmatmul.mubr.f32.gmra.mrb[0].mxu0 %v804
      %v806 = vpop.f32.mrb[0].mxu0
      %v807 = vadd.f32 %v527, %v806
      %v808 = vpop.f32.mrb[0].mxu0
      %809 = vmatprep.mubr.f32.mxu0 0.0
      %v810 = vand.u32 %v576, 4294901760
      %v811 = vsub.f32 %v576, %v810
      %v812 = vand.u32 %v811, 4294901760
      %v813 = vsub.f32 %v811, %v812
      %v814 = vand.u32 %v813, 4294901760
      %815 = vmatmul.mubr.f32.gmra.mrb[0].mxu0 %v814
      %v816 = vpop.f32.mrb[0].mxu0
      %v817 = vadd.f32 %v527, %v816
      %v818 = vpop.f32.mrb[0].mxu0
      %819 = vmatprep.mubr.f32.mxu0 0.0
      %v820 = vand.u32 %v579, 4294901760
      %v821 = vsub.f32 %v579, %v820
      %v822 = vand.u32 %v821, 4294901760
      %v823 = vsub.f32 %v821, %v822
      %v824 = vand.u32 %v823, 4294901760
      %825 = vmatmul.mubr.f32.gmra.mrb[0].mxu0 %v824
      %v826 = vpop.f32.mrb[0].mxu0
      %v827 = vadd.f32 %v527, %v826
      %v828 = vpop.f32.mrb[0].mxu0
      %829 = vmatprep.mubr.f32.mxu0 0.0
      %v830 = vand.u32 %v582, 4294901760
      %v831 = vsub.f32 %v582, %v830
      %v832 = vand.u32 %v831, 4294901760
      %v833 = vsub.f32 %v831, %v832
      %v834 = vand.u32 %v833, 4294901760
      %835 = vmatmul.mubr.f32.gmra.mrb[0].mxu0 %v834
      %v836 = vpop.f32.mrb[0].mxu0
      %v837 = vadd.f32 %v527, %v836
      %v838 = vpop.f32.mrb[0].mxu0
      %839 = vmatprep.mubr.f32.mxu0 0.0
      %v840 = vand.u32 %v585, 4294901760
      %v841 = vsub.f32 %v585, %v840
      %v842 = vand.u32 %v841, 4294901760
      %v843 = vsub.f32 %v841, %v842
      %v844 = vand.u32 %v843, 4294901760
      %845 = vmatmul.mubr.f32.gmra.mrb[0].mxu0 %v844
      %v846 = vpop.f32.mrb[0].mxu0
      %v847 = vadd.f32 %v527, %v846
      %v848 = vpop.f32.mrb[0].mxu0
      %849 = vdwg.mxu0
      %850 = vmatprep.subr.mxu0 0.0
      %v851 = vand.u32 %v514, 4294901760
      %v852 = vsub.f32 %v514, %v851
      %v853 = vand.u32 %v852, 4294901760
      %v854 = vsub.f32 %v852, %v853
      %v855 = vand.u32 %v854, 4294901760
      %856 = vmatpush1.msra.mxu0 %v855
      %857 = vmatprep.subr.mxu0 0.0
      %v858 = vand.u32 %v515, 4294901760
      %v859 = vsub.f32 %v515, %v858
      %v860 = vand.u32 %v859, 4294901760
      %v861 = vsub.f32 %v859, %v860
      %v862 = vand.u32 %v861, 4294901760
      %863 = vmatpush1.msra.mxu0 %v862
      %864 = vmatprep.subr.mxu0 0.0
      %v865 = vand.u32 %v516, 4294901760
      %v866 = vsub.f32 %v516, %v865
      %v867 = vand.u32 %v866, 4294901760
      %v868 = vsub.f32 %v866, %v867
      %v869 = vand.u32 %v868, 4294901760
      %870 = vmatpush1.msra.mxu0 %v869
      %871 = vmatprep.subr.mxu0 0.0
      %v872 = vand.u32 %v517, 4294901760
      %v873 = vsub.f32 %v517, %v872
      %v874 = vand.u32 %v873, 4294901760
      %v875 = vsub.f32 %v873, %v874
      %v876 = vand.u32 %v875, 4294901760
      %877 = vmatpush1.msra.mxu0 %v876
      %878 = vmatprep.subr.mxu0 0.0
      %v879 = vand.u32 %v518, 4294901760
      %v880 = vsub.f32 %v518, %v879
      %v881 = vand.u32 %v880, 4294901760
      %v882 = vsub.f32 %v880, %v881
      %v883 = vand.u32 %v882, 4294901760
      %884 = vmatpush1.msra.mxu0 %v883
      %885 = vmatprep.subr.mxu0 0.0
      %v886 = vand.u32 %v519, 4294901760
      %v887 = vsub.f32 %v519, %v886
      %v888 = vand.u32 %v887, 4294901760
      %v889 = vsub.f32 %v887, %v888
      %v890 = vand.u32 %v889, 4294901760
      %891 = vmatpush1.msra.mxu0 %v890
      %892 = vmatprep.subr.mxu0 0.0
      %v893 = vand.u32 %v520, 4294901760
      %v894 = vsub.f32 %v520, %v893
      %v895 = vand.u32 %v894, 4294901760
      %v896 = vsub.f32 %v894, %v895
      %v897 = vand.u32 %v896, 4294901760
      %898 = vmatpush1.msra.mxu0 %v897
      %899 = vmatprep.subr.mxu0 0.0
      %v900 = vand.u32 %v521, 4294901760
      %v901 = vsub.f32 %v521, %v900
      %v902 = vand.u32 %v901, 4294901760
      %v903 = vsub.f32 %v901, %v902
      %v904 = vand.u32 %v903, 4294901760
      %905 = vmatpush1.msra.mxu0 %v904
      %906 = vmatprep.subr.mxu0 0.0
      %907 = vmatpush1.msra.mxu0 0.0
      %908 = vmatprep.subr.mxu0 0.0
      %909 = vmatpush1.msra.mxu0 0.0
      %910 = vmatprep.subr.mxu0 0.0
      %911 = vmatpush1.msra.mxu0 0.0
      %912 = vmatprep.subr.mxu0 0.0
      %913 = vmatpush1.msra.mxu0 0.0
      %914 = vmatprep.subr.mxu0 0.0
      %915 = vmatpush1.msra.mxu0 0.0
      %916 = vmatprep.subr.mxu0 0.0
      %917 = vmatpush1.msra.mxu0 0.0
      %918 = vmatprep.subr.mxu0 0.0
      %919 = vmatpush1.msra.mxu0 0.0
      %920 = vmatprep.subr.mxu0 0.0
      %921 = vmatpush1.msra.mxu0 0.0
      %922 = vmatprep.subr.mxu0 0.0
      %923 = vmatpush1.msra.mxu0 0.0
      %924 = vmatprep.subr.mxu0 0.0
      %925 = vmatpush1.msra.mxu0 0.0
      %926 = vmatprep.subr.mxu0 0.0
      %927 = vmatpush1.msra.mxu0 0.0
      %928 = vmatprep.subr.mxu0 0.0
      %929 = vmatpush1.msra.mxu0 0.0
      %930 = vmatprep.subr.mxu0 0.0
      %931 = vmatpush1.msra.mxu0 0.0
      %932 = vmatprep.subr.mxu0 0.0
      %933 = vmatpush1.msra.mxu0 0.0
      %934 = vmatprep.subr.mxu0 0.0
      %935 = vmatpush1.msra.mxu0 0.0
      %936 = vmatprep.subr.mxu0 0.0
      %937 = vmatpush1.msra.mxu0 0.0
      %938 = vmatprep.subr.mxu0 0.0
      %939 = vmatpush1.msra.mxu0 0.0
      %940 = vmatprep.subr.mxu0 0.0
      %941 = vmatpush1.msra.mxu0 0.0
      %942 = vmatprep.subr.mxu0 0.0
      %943 = vmatpush1.msra.mxu0 0.0
      %944 = vmatprep.subr.mxu0 0.0
      %945 = vmatpush1.msra.mxu0 0.0
      %946 = vmatprep.subr.mxu0 0.0
      %947 = vmatpush1.msra.mxu0 0.0
      %948 = vmatprep.subr.mxu0 0.0
      %949 = vmatpush1.msra.mxu0 0.0
      %950 = vmatprep.subr.mxu0 0.0
      %951 = vmatpush1.msra.mxu0 0.0
      %952 = vmatprep.subr.mxu0 0.0
      %953 = vmatpush1.msra.mxu0 0.0
      %954 = vmatprep.mubr.f32.mxu0 0.0
      %v955 = vand.u32 %v531, 4294901760
      %956 = vmatmul.mubr.f32.gmra.mrb[0].mxu0 %v955
      %v957 = vpop.f32.mrb[0].mxu0
      %v958 = vadd.f32 %v667, %v957
      %v959 = vpop.f32.mrb[0].mxu0
      %960 = vmatprep.mubr.f32.mxu0 0.0
      %v961 = vand.u32 %v534, 4294901760
      %962 = vmatmul.mubr.f32.gmra.mrb[0].mxu0 %v961
      %v963 = vpop.f32.mrb[0].mxu0
      %v964 = vadd.f32 %v677, %v963
      %v965 = vpop.f32.mrb[0].mxu0
      %966 = vmatprep.mubr.f32.mxu0 0.0
      %v967 = vand.u32 %v537, 4294901760
      %968 = vmatmul.mubr.f32.gmra.mrb[0].mxu0 %v967
      %v969 = vpop.f32.mrb[0].mxu0
      %v970 = vadd.f32 %v687, %v969
      %v971 = vpop.f32.mrb[0].mxu0
      %972 = vmatprep.mubr.f32.mxu0 0.0
      %v973 = vand.u32 %v540, 4294901760
      %974 = vmatmul.mubr.f32.gmra.mrb[0].mxu0 %v973
      %v975 = vpop.f32.mrb[0].mxu0
      %v976 = vadd.f32 %v697, %v975
      %v977 = vpop.f32.mrb[0].mxu0
      %978 = vmatprep.mubr.f32.mxu0 0.0
      %v979 = vand.u32 %v543, 4294901760
      %980 = vmatmul.mubr.f32.gmra.mrb[0].mxu0 %v979
      %v981 = vpop.f32.mrb[0].mxu0
      %v982 = vadd.f32 %v707, %v981
      %v983 = vpop.f32.mrb[0].mxu0
      %984 = vmatprep.mubr.f32.mxu0 0.0
      %v985 = vand.u32 %v546, 4294901760
      %986 = vmatmul.mubr.f32.gmra.mrb[0].mxu0 %v985
      %v987 = vpop.f32.mrb[0].mxu0
      %v988 = vadd.f32 %v717, %v987
      %v989 = vpop.f32.mrb[0].mxu0
      %990 = vmatprep.mubr.f32.mxu0 0.0
      %v991 = vand.u32 %v549, 4294901760
      %992 = vmatmul.mubr.f32.gmra.mrb[0].mxu0 %v991
      %v993 = vpop.f32.mrb[0].mxu0
      %v994 = vadd.f32 %v727, %v993
      %v995 = vpop.f32.mrb[0].mxu0
      %996 = vmatprep.mubr.f32.mxu0 0.0
      %v997 = vand.u32 %v552, 4294901760
      %998 = vmatmul.mubr.f32.gmra.mrb[0].mxu0 %v997
      %v999 = vpop.f32.mrb[0].mxu0
      %v1000 = vadd.f32 %v737, %v999
      %v1001 = vpop.f32.mrb[0].mxu0
      %1002 = vmatprep.mubr.f32.mxu0 0.0
      %v1003 = vand.u32 %v555, 4294901760
      %1004 = vmatmul.mubr.f32.gmra.mrb[0].mxu0 %v1003
      %v1005 = vpop.f32.mrb[0].mxu0
      %v1006 = vadd.f32 %v747, %v1005
      %v1007 = vpop.f32.mrb[0].mxu0
      %1008 = vmatprep.mubr.f32.mxu0 0.0
      %v1009 = vand.u32 %v558, 4294901760
      %1010 = vmatmul.mubr.f32.gmra.mrb[0].mxu0 %v1009
      %v1011 = vpop.f32.mrb[0].mxu0
      %v1012 = vadd.f32 %v757, %v1011
      %v1013 = vpop.f32.mrb[0].mxu0
      %1014 = vmatprep.mubr.f32.mxu0 0.0
      %v1015 = vand.u32 %v561, 4294901760
      %1016 = vmatmul.mubr.f32.gmra.mrb[0].mxu0 %v1015
      %v1017 = vpop.f32.mrb[0].mxu0
      %v1018 = vadd.f32 %v767, %v1017
      %v1019 = vpop.f32.mrb[0].mxu0
      %1020 = vmatprep.mubr.f32.mxu0 0.0
      %v1021 = vand.u32 %v564, 4294901760
      %1022 = vmatmul.mubr.f32.gmra.mrb[0].mxu0 %v1021
      %v1023 = vpop.f32.mrb[0].mxu0
      %v1024 = vadd.f32 %v777, %v1023
      %v1025 = vpop.f32.mrb[0].mxu0
      %1026 = vmatprep.mubr.f32.mxu0 0.0
      %v1027 = vand.u32 %v567, 4294901760
      %1028 = vmatmul.mubr.f32.gmra.mrb[0].mxu0 %v1027
      %v1029 = vpop.f32.mrb[0].mxu0
      %v1030 = vadd.f32 %v787, %v1029
      %v1031 = vpop.f32.mrb[0].mxu0
      %1032 = vmatprep.mubr.f32.mxu0 0.0
      %v1033 = vand.u32 %v570, 4294901760
      %1034 = vmatmul.mubr.f32.gmra.mrb[0].mxu0 %v1033
      %v1035 = vpop.f32.mrb[0].mxu0
      %v1036 = vadd.f32 %v797, %v1035
      %v1037 = vpop.f32.mrb[0].mxu0
      %1038 = vmatprep.mubr.f32.mxu0 0.0
      %v1039 = vand.u32 %v573, 4294901760
      %1040 = vmatmul.mubr.f32.gmra.mrb[0].mxu0 %v1039
      %v1041 = vpop.f32.mrb[0].mxu0
      %v1042 = vadd.f32 %v807, %v1041
      %v1043 = vpop.f32.mrb[0].mxu0
      %1044 = vmatprep.mubr.f32.mxu0 0.0
      %v1045 = vand.u32 %v576, 4294901760
      %1046 = vmatmul.mubr.f32.gmra.mrb[0].mxu0 %v1045
      %v1047 = vpop.f32.mrb[0].mxu0
      %v1048 = vadd.f32 %v817, %v1047
      %v1049 = vpop.f32.mrb[0].mxu0
      %1050 = vmatprep.mubr.f32.mxu0 0.0
      %v1051 = vand.u32 %v579, 4294901760
      %1052 = vmatmul.mubr.f32.gmra.mrb[0].mxu0 %v1051
      %v1053 = vpop.f32.mrb[0].mxu0
      %v1054 = vadd.f32 %v827, %v1053
      %v1055 = vpop.f32.mrb[0].mxu0
      %1056 = vmatprep.mubr.f32.mxu0 0.0
      %v1057 = vand.u32 %v582, 4294901760
      %1058 = vmatmul.mubr.f32.gmra.mrb[0].mxu0 %v1057
      %v1059 = vpop.f32.mrb[0].mxu0
      %v1060 = vadd.f32 %v837, %v1059
      %v1061 = vpop.f32.mrb[0].mxu0
      %1062 = vmatprep.mubr.f32.mxu0 0.0
      %v1063 = vand.u32 %v585, 4294901760
      %1064 = vmatmul.mubr.f32.gmra.mrb[0].mxu0 %v1063
      %v1065 = vpop.f32.mrb[0].mxu0
      %v1066 = vadd.f32 %v847, %v1065
      %v1067 = vpop.f32.mrb[0].mxu0
      %1068 = vdwg.mxu0
      %1069 = vmatprep.subr.mxu0 0.0
      %v1070 = vand.u32 %v514, 4294901760
      %v1071 = vsub.f32 %v514, %v1070
      %1072 = vmatpush1.msra.mxu0 %v1071
      %1073 = vmatprep.subr.mxu0 0.0
      %v1074 = vand.u32 %v515, 4294901760
      %v1075 = vsub.f32 %v515, %v1074
      %1076 = vmatpush1.msra.mxu0 %v1075
      %1077 = vmatprep.subr.mxu0 0.0
      %v1078 = vand.u32 %v516, 4294901760
      %v1079 = vsub.f32 %v516, %v1078
      %1080 = vmatpush1.msra.mxu0 %v1079
      %1081 = vmatprep.subr.mxu0 0.0
      %v1082 = vand.u32 %v517, 4294901760
      %v1083 = vsub.f32 %v517, %v1082
      %1084 = vmatpush1.msra.mxu0 %v1083
      %1085 = vmatprep.subr.mxu0 0.0
      %v1086 = vand.u32 %v518, 4294901760
      %v1087 = vsub.f32 %v518, %v1086
      %1088 = vmatpush1.msra.mxu0 %v1087
      %1089 = vmatprep.subr.mxu0 0.0
      %v1090 = vand.u32 %v519, 4294901760
      %v1091 = vsub.f32 %v519, %v1090
      %1092 = vmatpush1.msra.mxu0 %v1091
      %1093 = vmatprep.subr.mxu0 0.0
      %v1094 = vand.u32 %v520, 4294901760
      %v1095 = vsub.f32 %v520, %v1094
      %1096 = vmatpush1.msra.mxu0 %v1095
      %1097 = vmatprep.subr.mxu0 0.0
      %v1098 = vand.u32 %v521, 4294901760
      %v1099 = vsub.f32 %v521, %v1098
      %1100 = vmatpush1.msra.mxu0 %v1099
      %1101 = vmatprep.subr.mxu0 0.0
      %1102 = vmatpush1.msra.mxu0 0.0
      %1103 = vmatprep.subr.mxu0 0.0
      %1104 = vmatpush1.msra.mxu0 0.0
      %1105 = vmatprep.subr.mxu0 0.0
      %1106 = vmatpush1.msra.mxu0 0.0
      %1107 = vmatprep.subr.mxu0 0.0
      %1108 = vmatpush1.msra.mxu0 0.0
      %1109 = vmatprep.subr.mxu0 0.0
      %1110 = vmatpush1.msra.mxu0 0.0
      %1111 = vmatprep.subr.mxu0 0.0
      %1112 = vmatpush1.msra.mxu0 0.0
      %1113 = vmatprep.subr.mxu0 0.0
      %1114 = vmatpush1.msra.mxu0 0.0
      %1115 = vmatprep.subr.mxu0 0.0
      %1116 = vmatpush1.msra.mxu0 0.0
      %1117 = vmatprep.subr.mxu0 0.0
      %1118 = vmatpush1.msra.mxu0 0.0
      %1119 = vmatprep.subr.mxu0 0.0
      %1120 = vmatpush1.msra.mxu0 0.0
      %1121 = vmatprep.subr.mxu0 0.0
      %1122 = vmatpush1.msra.mxu0 0.0
      %1123 = vmatprep.subr.mxu0 0.0
      %1124 = vmatpush1.msra.mxu0 0.0
      %1125 = vmatprep.subr.mxu0 0.0
      %1126 = vmatpush1.msra.mxu0 0.0
      %1127 = vmatprep.subr.mxu0 0.0
      %1128 = vmatpush1.msra.mxu0 0.0
      %1129 = vmatprep.subr.mxu0 0.0
      %1130 = vmatpush1.msra.mxu0 0.0
      %1131 = vmatprep.subr.mxu0 0.0
      %1132 = vmatpush1.msra.mxu0 0.0
      %1133 = vmatprep.subr.mxu0 0.0
      %1134 = vmatpush1.msra.mxu0 0.0
      %1135 = vmatprep.subr.mxu0 0.0
      %1136 = vmatpush1.msra.mxu0 0.0
      %1137 = vmatprep.subr.mxu0 0.0
      %1138 = vmatpush1.msra.mxu0 0.0
      %1139 = vmatprep.subr.mxu0 0.0
      %1140 = vmatpush1.msra.mxu0 0.0
      %1141 = vmatprep.subr.mxu0 0.0
      %1142 = vmatpush1.msra.mxu0 0.0
      %1143 = vmatprep.subr.mxu0 0.0
      %1144 = vmatpush1.msra.mxu0 0.0
      %1145 = vmatprep.subr.mxu0 0.0
      %1146 = vmatpush1.msra.mxu0 0.0
      %1147 = vmatprep.subr.mxu0 0.0
      %1148 = vmatpush1.msra.mxu0 0.0
      %1149 = vmatprep.mubr.f32.mxu0 0.0
      %v1150 = vand.u32 %v531, 4294901760
      %v1151 = vsub.f32 %v531, %v1150
      %1152 = vmatmul.mubr.f32.gmra.mrb[0].mxu0 %v1151
      %v1153 = vpop.f32.mrb[0].mxu0
      %v1154 = vadd.f32 %v958, %v1153
      %v1155 = vpop.f32.mrb[0].mxu0
      %1156 = vmatprep.mubr.f32.mxu0 0.0
      %v1157 = vand.u32 %v534, 4294901760
      %v1158 = vsub.f32 %v534, %v1157
      %1159 = vmatmul.mubr.f32.gmra.mrb[0].mxu0 %v1158
      %v1160 = vpop.f32.mrb[0].mxu0
      %v1161 = vadd.f32 %v964, %v1160
      %v1162 = vpop.f32.mrb[0].mxu0
      %1163 = vmatprep.mubr.f32.mxu0 0.0
      %v1164 = vand.u32 %v537, 4294901760
      %v1165 = vsub.f32 %v537, %v1164
      %1166 = vmatmul.mubr.f32.gmra.mrb[0].mxu0 %v1165
      %v1167 = vpop.f32.mrb[0].mxu0
      %v1168 = vadd.f32 %v970, %v1167
      %v1169 = vpop.f32.mrb[0].mxu0
      %1170 = vmatprep.mubr.f32.mxu0 0.0
      %v1171 = vand.u32 %v540, 4294901760
      %v1172 = vsub.f32 %v540, %v1171
      %1173 = vmatmul.mubr.f32.gmra.mrb[0].mxu0 %v1172
      %v1174 = vpop.f32.mrb[0].mxu0
      %v1175 = vadd.f32 %v976, %v1174
      %v1176 = vpop.f32.mrb[0].mxu0
      %1177 = vmatprep.mubr.f32.mxu0 0.0
      %v1178 = vand.u32 %v543, 4294901760
      %v1179 = vsub.f32 %v543, %v1178
      %1180 = vmatmul.mubr.f32.gmra.mrb[0].mxu0 %v1179
      %v1181 = vpop.f32.mrb[0].mxu0
      %v1182 = vadd.f32 %v982, %v1181
      %v1183 = vpop.f32.mrb[0].mxu0
      %1184 = vmatprep.mubr.f32.mxu0 0.0
      %v1185 = vand.u32 %v546, 4294901760
      %v1186 = vsub.f32 %v546, %v1185
      %1187 = vmatmul.mubr.f32.gmra.mrb[0].mxu0 %v1186
      %v1188 = vpop.f32.mrb[0].mxu0
      %v1189 = vadd.f32 %v988, %v1188
      %v1190 = vpop.f32.mrb[0].mxu0
      %1191 = vmatprep.mubr.f32.mxu0 0.0
      %v1192 = vand.u32 %v549, 4294901760
      %v1193 = vsub.f32 %v549, %v1192
      %1194 = vmatmul.mubr.f32.gmra.mrb[0].mxu0 %v1193
      %v1195 = vpop.f32.mrb[0].mxu0
      %v1196 = vadd.f32 %v994, %v1195
      %v1197 = vpop.f32.mrb[0].mxu0
      %1198 = vmatprep.mubr.f32.mxu0 0.0
      %v1199 = vand.u32 %v552, 4294901760
      %v1200 = vsub.f32 %v552, %v1199
      %1201 = vmatmul.mubr.f32.gmra.mrb[0].mxu0 %v1200
      %v1202 = vpop.f32.mrb[0].mxu0
      %v1203 = vadd.f32 %v1000, %v1202
      %v1204 = vpop.f32.mrb[0].mxu0
      %1205 = vmatprep.mubr.f32.mxu0 0.0
      %v1206 = vand.u32 %v555, 4294901760
      %v1207 = vsub.f32 %v555, %v1206
      %1208 = vmatmul.mubr.f32.gmra.mrb[0].mxu0 %v1207
      %v1209 = vpop.f32.mrb[0].mxu0
      %v1210 = vadd.f32 %v1006, %v1209
      %v1211 = vpop.f32.mrb[0].mxu0
      %1212 = vmatprep.mubr.f32.mxu0 0.0
      %v1213 = vand.u32 %v558, 4294901760
      %v1214 = vsub.f32 %v558, %v1213
      %1215 = vmatmul.mubr.f32.gmra.mrb[0].mxu0 %v1214
      %v1216 = vpop.f32.mrb[0].mxu0
      %v1217 = vadd.f32 %v1012, %v1216
      %v1218 = vpop.f32.mrb[0].mxu0
      %1219 = vmatprep.mubr.f32.mxu0 0.0
      %v1220 = vand.u32 %v561, 4294901760
      %v1221 = vsub.f32 %v561, %v1220
      %1222 = vmatmul.mubr.f32.gmra.mrb[0].mxu0 %v1221
      %v1223 = vpop.f32.mrb[0].mxu0
      %v1224 = vadd.f32 %v1018, %v1223
      %v1225 = vpop.f32.mrb[0].mxu0
      %1226 = vmatprep.mubr.f32.mxu0 0.0
      %v1227 = vand.u32 %v564, 4294901760
      %v1228 = vsub.f32 %v564, %v1227
      %1229 = vmatmul.mubr.f32.gmra.mrb[0].mxu0 %v1228
      %v1230 = vpop.f32.mrb[0].mxu0
      %v1231 = vadd.f32 %v1024, %v1230
      %v1232 = vpop.f32.mrb[0].mxu0
      %1233 = vmatprep.mubr.f32.mxu0 0.0
      %v1234 = vand.u32 %v567, 4294901760
      %v1235 = vsub.f32 %v567, %v1234
      %1236 = vmatmul.mubr.f32.gmra.mrb[0].mxu0 %v1235
      %v1237 = vpop.f32.mrb[0].mxu0
      %v1238 = vadd.f32 %v1030, %v1237
      %v1239 = vpop.f32.mrb[0].mxu0
      %1240 = vmatprep.mubr.f32.mxu0 0.0
      %v1241 = vand.u32 %v570, 4294901760
      %v1242 = vsub.f32 %v570, %v1241
      %1243 = vmatmul.mubr.f32.gmra.mrb[0].mxu0 %v1242
      %v1244 = vpop.f32.mrb[0].mxu0
      %v1245 = vadd.f32 %v1036, %v1244
      %v1246 = vpop.f32.mrb[0].mxu0
      %1247 = vmatprep.mubr.f32.mxu0 0.0
      %v1248 = vand.u32 %v573, 4294901760
      %v1249 = vsub.f32 %v573, %v1248
      %1250 = vmatmul.mubr.f32.gmra.mrb[0].mxu0 %v1249
      %v1251 = vpop.f32.mrb[0].mxu0
      %v1252 = vadd.f32 %v1042, %v1251
      %v1253 = vpop.f32.mrb[0].mxu0
      %1254 = vmatprep.mubr.f32.mxu0 0.0
      %v1255 = vand.u32 %v576, 4294901760
      %v1256 = vsub.f32 %v576, %v1255
      %1257 = vmatmul.mubr.f32.gmra.mrb[0].mxu0 %v1256
      %v1258 = vpop.f32.mrb[0].mxu0
      %v1259 = vadd.f32 %v1048, %v1258
      %v1260 = vpop.f32.mrb[0].mxu0
      %1261 = vmatprep.mubr.f32.mxu0 0.0
      %v1262 = vand.u32 %v579, 4294901760
      %v1263 = vsub.f32 %v579, %v1262
      %1264 = vmatmul.mubr.f32.gmra.mrb[0].mxu0 %v1263
      %v1265 = vpop.f32.mrb[0].mxu0
      %v1266 = vadd.f32 %v1054, %v1265
      %v1267 = vpop.f32.mrb[0].mxu0
      %1268 = vmatprep.mubr.f32.mxu0 0.0
      %v1269 = vand.u32 %v582, 4294901760
      %v1270 = vsub.f32 %v582, %v1269
      %1271 = vmatmul.mubr.f32.gmra.mrb[0].mxu0 %v1270
      %v1272 = vpop.f32.mrb[0].mxu0
      %v1273 = vadd.f32 %v1060, %v1272
      %v1274 = vpop.f32.mrb[0].mxu0
      %1275 = vmatprep.mubr.f32.mxu0 0.0
      %v1276 = vand.u32 %v585, 4294901760
      %v1277 = vsub.f32 %v585, %v1276
      %1278 = vmatmul.mubr.f32.gmra.mrb[0].mxu0 %v1277
      %v1279 = vpop.f32.mrb[0].mxu0
      %v1280 = vadd.f32 %v1066, %v1279
      %v1281 = vpop.f32.mrb[0].mxu0
      %1282 = vdwg.mxu0
      %1283 = vmatprep.subr.mxu0 0.0
      %v1284 = vand.u32 %v514, 4294901760
      %1285 = vmatpush1.msra.mxu0 %v1284
      %1286 = vmatprep.subr.mxu0 0.0
      %v1287 = vand.u32 %v515, 4294901760
      %1288 = vmatpush1.msra.mxu0 %v1287
      %1289 = vmatprep.subr.mxu0 0.0
      %v1290 = vand.u32 %v516, 4294901760
      %1291 = vmatpush1.msra.mxu0 %v1290
      %1292 = vmatprep.subr.mxu0 0.0
      %v1293 = vand.u32 %v517, 4294901760
      %1294 = vmatpush1.msra.mxu0 %v1293
      %1295 = vmatprep.subr.mxu0 0.0
      %v1296 = vand.u32 %v518, 4294901760
      %1297 = vmatpush1.msra.mxu0 %v1296
      %1298 = vmatprep.subr.mxu0 0.0
      %v1299 = vand.u32 %v519, 4294901760
      %1300 = vmatpush1.msra.mxu0 %v1299
      %1301 = vmatprep.subr.mxu0 0.0
      %v1302 = vand.u32 %v520, 4294901760
      %1303 = vmatpush1.msra.mxu0 %v1302
      %1304 = vmatprep.subr.mxu0 0.0
      %v1305 = vand.u32 %v521, 4294901760
      %1306 = vmatpush1.msra.mxu0 %v1305
      %1307 = vmatprep.subr.mxu0 0.0
      %1308 = vmatpush1.msra.mxu0 0.0
      %1309 = vmatprep.subr.mxu0 0.0
      %1310 = vmatpush1.msra.mxu0 0.0
      %1311 = vmatprep.subr.mxu0 0.0
      %1312 = vmatpush1.msra.mxu0 0.0
      %1313 = vmatprep.subr.mxu0 0.0
      %1314 = vmatpush1.msra.mxu0 0.0
      %1315 = vmatprep.subr.mxu0 0.0
      %1316 = vmatpush1.msra.mxu0 0.0
      %1317 = vmatprep.subr.mxu0 0.0
      %1318 = vmatpush1.msra.mxu0 0.0
      %1319 = vmatprep.subr.mxu0 0.0
      %1320 = vmatpush1.msra.mxu0 0.0
      %1321 = vmatprep.subr.mxu0 0.0
      %1322 = vmatpush1.msra.mxu0 0.0
      %1323 = vmatprep.subr.mxu0 0.0
      %1324 = vmatpush1.msra.mxu0 0.0
      %1325 = vmatprep.subr.mxu0 0.0
      %1326 = vmatpush1.msra.mxu0 0.0
      %1327 = vmatprep.subr.mxu0 0.0
      %1328 = vmatpush1.msra.mxu0 0.0
      %1329 = vmatprep.subr.mxu0 0.0
      %1330 = vmatpush1.msra.mxu0 0.0
      %1331 = vmatprep.subr.mxu0 0.0
      %1332 = vmatpush1.msra.mxu0 0.0
      %1333 = vmatprep.subr.mxu0 0.0
      %1334 = vmatpush1.msra.mxu0 0.0
      %1335 = vmatprep.subr.mxu0 0.0
      %1336 = vmatpush1.msra.mxu0 0.0
      %1337 = vmatprep.subr.mxu0 0.0
      %1338 = vmatpush1.msra.mxu0 0.0
      %1339 = vmatprep.subr.mxu0 0.0
      %1340 = vmatpush1.msra.mxu0 0.0
      %1341 = vmatprep.subr.mxu0 0.0
      %1342 = vmatpush1.msra.mxu0 0.0
      %1343 = vmatprep.subr.mxu0 0.0
      %1344 = vmatpush1.msra.mxu0 0.0
      %1345 = vmatprep.subr.mxu0 0.0
      %1346 = vmatpush1.msra.mxu0 0.0
      %1347 = vmatprep.subr.mxu0 0.0
      %1348 = vmatpush1.msra.mxu0 0.0
      %1349 = vmatprep.subr.mxu0 0.0
      %1350 = vmatpush1.msra.mxu0 0.0
      %1351 = vmatprep.subr.mxu0 0.0
      %1352 = vmatpush1.msra.mxu0 0.0
      %1353 = vmatprep.subr.mxu0 0.0
      %1354 = vmatpush1.msra.mxu0 0.0
      %1355 = vmatprep.mubr.f32.mxu0 0.0
      %v1356 = vand.u32 %v531, 4294901760
      %v1357 = vsub.f32 %v531, %v1356
      %v1358 = vand.u32 %v1357, 4294901760
      %1359 = vmatmul.mubr.f32.gmra.mrb[0].mxu0 %v1358
      %v1360 = vpop.f32.mrb[0].mxu0
      %v1361 = vadd.f32 %v1154, %v1360
      %v1362 = vpop.f32.mrb[0].mxu0
      %1363 = vmatprep.mubr.f32.mxu0 0.0
      %v1364 = vand.u32 %v534, 4294901760
      %v1365 = vsub.f32 %v534, %v1364
      %v1366 = vand.u32 %v1365, 4294901760
      %1367 = vmatmul.mubr.f32.gmra.mrb[0].mxu0 %v1366
      %v1368 = vpop.f32.mrb[0].mxu0
      %v1369 = vadd.f32 %v1161, %v1368
      %v1370 = vpop.f32.mrb[0].mxu0
      %1371 = vmatprep.mubr.f32.mxu0 0.0
      %v1372 = vand.u32 %v537, 4294901760
      %v1373 = vsub.f32 %v537, %v1372
      %v1374 = vand.u32 %v1373, 4294901760
      %1375 = vmatmul.mubr.f32.gmra.mrb[0].mxu0 %v1374
      %v1376 = vpop.f32.mrb[0].mxu0
      %v1377 = vadd.f32 %v1168, %v1376
      %v1378 = vpop.f32.mrb[0].mxu0
      %1379 = vmatprep.mubr.f32.mxu0 0.0
      %v1380 = vand.u32 %v540, 4294901760
      %v1381 = vsub.f32 %v540, %v1380
      %v1382 = vand.u32 %v1381, 4294901760
      %1383 = vmatmul.mubr.f32.gmra.mrb[0].mxu0 %v1382
      %v1384 = vpop.f32.mrb[0].mxu0
      %v1385 = vadd.f32 %v1175, %v1384
      %v1386 = vpop.f32.mrb[0].mxu0
      %1387 = vmatprep.mubr.f32.mxu0 0.0
      %v1388 = vand.u32 %v543, 4294901760
      %v1389 = vsub.f32 %v543, %v1388
      %v1390 = vand.u32 %v1389, 4294901760
      %1391 = vmatmul.mubr.f32.gmra.mrb[0].mxu0 %v1390
      %v1392 = vpop.f32.mrb[0].mxu0
      %v1393 = vadd.f32 %v1182, %v1392
      %v1394 = vpop.f32.mrb[0].mxu0
      %1395 = vmatprep.mubr.f32.mxu0 0.0
      %v1396 = vand.u32 %v546, 4294901760
      %v1397 = vsub.f32 %v546, %v1396
      %v1398 = vand.u32 %v1397, 4294901760
      %1399 = vmatmul.mubr.f32.gmra.mrb[0].mxu0 %v1398
      %v1400 = vpop.f32.mrb[0].mxu0
      %v1401 = vadd.f32 %v1189, %v1400
      %v1402 = vpop.f32.mrb[0].mxu0
      %1403 = vmatprep.mubr.f32.mxu0 0.0
      %v1404 = vand.u32 %v549, 4294901760
      %v1405 = vsub.f32 %v549, %v1404
      %v1406 = vand.u32 %v1405, 4294901760
      %1407 = vmatmul.mubr.f32.gmra.mrb[0].mxu0 %v1406
      %v1408 = vpop.f32.mrb[0].mxu0
      %v1409 = vadd.f32 %v1196, %v1408
      %v1410 = vpop.f32.mrb[0].mxu0
      %1411 = vmatprep.mubr.f32.mxu0 0.0
      %v1412 = vand.u32 %v552, 4294901760
      %v1413 = vsub.f32 %v552, %v1412
      %v1414 = vand.u32 %v1413, 4294901760
      %1415 = vmatmul.mubr.f32.gmra.mrb[0].mxu0 %v1414
      %v1416 = vpop.f32.mrb[0].mxu0
      %v1417 = vadd.f32 %v1203, %v1416
      %v1418 = vpop.f32.mrb[0].mxu0
      %1419 = vmatprep.mubr.f32.mxu0 0.0
      %v1420 = vand.u32 %v555, 4294901760
      %v1421 = vsub.f32 %v555, %v1420
      %v1422 = vand.u32 %v1421, 4294901760
      %1423 = vmatmul.mubr.f32.gmra.mrb[0].mxu0 %v1422
      %v1424 = vpop.f32.mrb[0].mxu0
      %v1425 = vadd.f32 %v1210, %v1424
      %v1426 = vpop.f32.mrb[0].mxu0
      %1427 = vmatprep.mubr.f32.mxu0 0.0
      %v1428 = vand.u32 %v558, 4294901760
      %v1429 = vsub.f32 %v558, %v1428
      %v1430 = vand.u32 %v1429, 4294901760
      %1431 = vmatmul.mubr.f32.gmra.mrb[0].mxu0 %v1430
      %v1432 = vpop.f32.mrb[0].mxu0
      %v1433 = vadd.f32 %v1217, %v1432
      %v1434 = vpop.f32.mrb[0].mxu0
      %1435 = vmatprep.mubr.f32.mxu0 0.0
      %v1436 = vand.u32 %v561, 4294901760
      %v1437 = vsub.f32 %v561, %v1436
      %v1438 = vand.u32 %v1437, 4294901760
      %1439 = vmatmul.mubr.f32.gmra.mrb[0].mxu0 %v1438
      %v1440 = vpop.f32.mrb[0].mxu0
      %v1441 = vadd.f32 %v1224, %v1440
      %v1442 = vpop.f32.mrb[0].mxu0
      %1443 = vmatprep.mubr.f32.mxu0 0.0
      %v1444 = vand.u32 %v564, 4294901760
      %v1445 = vsub.f32 %v564, %v1444
      %v1446 = vand.u32 %v1445, 4294901760
      %1447 = vmatmul.mubr.f32.gmra.mrb[0].mxu0 %v1446
      %v1448 = vpop.f32.mrb[0].mxu0
      %v1449 = vadd.f32 %v1231, %v1448
      %v1450 = vpop.f32.mrb[0].mxu0
      %1451 = vmatprep.mubr.f32.mxu0 0.0
      %v1452 = vand.u32 %v567, 4294901760
      %v1453 = vsub.f32 %v567, %v1452
      %v1454 = vand.u32 %v1453, 4294901760
      %1455 = vmatmul.mubr.f32.gmra.mrb[0].mxu0 %v1454
      %v1456 = vpop.f32.mrb[0].mxu0
      %v1457 = vadd.f32 %v1238, %v1456
      %v1458 = vpop.f32.mrb[0].mxu0
      %1459 = vmatprep.mubr.f32.mxu0 0.0
      %v1460 = vand.u32 %v570, 4294901760
      %v1461 = vsub.f32 %v570, %v1460
      %v1462 = vand.u32 %v1461, 4294901760
      %1463 = vmatmul.mubr.f32.gmra.mrb[0].mxu0 %v1462
      %v1464 = vpop.f32.mrb[0].mxu0
      %v1465 = vadd.f32 %v1245, %v1464
      %v1466 = vpop.f32.mrb[0].mxu0
      %1467 = vmatprep.mubr.f32.mxu0 0.0
      %v1468 = vand.u32 %v573, 4294901760
      %v1469 = vsub.f32 %v573, %v1468
      %v1470 = vand.u32 %v1469, 4294901760
      %1471 = vmatmul.mubr.f32.gmra.mrb[0].mxu0 %v1470
      %v1472 = vpop.f32.mrb[0].mxu0
      %v1473 = vadd.f32 %v1252, %v1472
      %v1474 = vpop.f32.mrb[0].mxu0
      %1475 = vmatprep.mubr.f32.mxu0 0.0
      %v1476 = vand.u32 %v576, 4294901760
      %v1477 = vsub.f32 %v576, %v1476
      %v1478 = vand.u32 %v1477, 4294901760
      %1479 = vmatmul.mubr.f32.gmra.mrb[0].mxu0 %v1478
      %v1480 = vpop.f32.mrb[0].mxu0
      %v1481 = vadd.f32 %v1259, %v1480
      %v1482 = vpop.f32.mrb[0].mxu0
      %1483 = vmatprep.mubr.f32.mxu0 0.0
      %v1484 = vand.u32 %v579, 4294901760
      %v1485 = vsub.f32 %v579, %v1484
      %v1486 = vand.u32 %v1485, 4294901760
      %1487 = vmatmul.mubr.f32.gmra.mrb[0].mxu0 %v1486
      %v1488 = vpop.f32.mrb[0].mxu0
      %v1489 = vadd.f32 %v1266, %v1488
      %v1490 = vpop.f32.mrb[0].mxu0
      %1491 = vmatprep.mubr.f32.mxu0 0.0
      %v1492 = vand.u32 %v582, 4294901760
      %v1493 = vsub.f32 %v582, %v1492
      %v1494 = vand.u32 %v1493, 4294901760
      %1495 = vmatmul.mubr.f32.gmra.mrb[0].mxu0 %v1494
      %v1496 = vpop.f32.mrb[0].mxu0
      %v1497 = vadd.f32 %v1273, %v1496
      %v1498 = vpop.f32.mrb[0].mxu0
      %1499 = vmatprep.mubr.f32.mxu0 0.0
      %v1500 = vand.u32 %v585, 4294901760
      %v1501 = vsub.f32 %v585, %v1500
      %v1502 = vand.u32 %v1501, 4294901760
      %1503 = vmatmul.mubr.f32.gmra.mrb[0].mxu0 %v1502
      %v1504 = vpop.f32.mrb[0].mxu0
      %v1505 = vadd.f32 %v1280, %v1504
      %v1506 = vpop.f32.mrb[0].mxu0
      %1507 = vdwg.mxu0
      %1508 = vmatprep.subr.mxu0 0.0
      %v1509 = vand.u32 %v514, 4294901760
      %v1510 = vsub.f32 %v514, %v1509
      %v1511 = vand.u32 %v1510, 4294901760
      %1512 = vmatpush1.msra.mxu0 %v1511
      %1513 = vmatprep.subr.mxu0 0.0
      %v1514 = vand.u32 %v515, 4294901760
      %v1515 = vsub.f32 %v515, %v1514
      %v1516 = vand.u32 %v1515, 4294901760
      %1517 = vmatpush1.msra.mxu0 %v1516
      %1518 = vmatprep.subr.mxu0 0.0
      %v1519 = vand.u32 %v516, 4294901760
      %v1520 = vsub.f32 %v516, %v1519
      %v1521 = vand.u32 %v1520, 4294901760
      %1522 = vmatpush1.msra.mxu0 %v1521
      %1523 = vmatprep.subr.mxu0 0.0
      %v1524 = vand.u32 %v517, 4294901760
      %v1525 = vsub.f32 %v517, %v1524
      %v1526 = vand.u32 %v1525, 4294901760
      %1527 = vmatpush1.msra.mxu0 %v1526
      %1528 = vmatprep.subr.mxu0 0.0
      %v1529 = vand.u32 %v518, 4294901760
      %v1530 = vsub.f32 %v518, %v1529
      %v1531 = vand.u32 %v1530, 4294901760
      %1532 = vmatpush1.msra.mxu0 %v1531
      %1533 = vmatprep.subr.mxu0 0.0
      %v1534 = vand.u32 %v519, 4294901760
      %v1535 = vsub.f32 %v519, %v1534
      %v1536 = vand.u32 %v1535, 4294901760
      %1537 = vmatpush1.msra.mxu0 %v1536
      %1538 = vmatprep.subr.mxu0 0.0
      %v1539 = vand.u32 %v520, 4294901760
      %v1540 = vsub.f32 %v520, %v1539
      %v1541 = vand.u32 %v1540, 4294901760
      %1542 = vmatpush1.msra.mxu0 %v1541
      %1543 = vmatprep.subr.mxu0 0.0
      %v1544 = vand.u32 %v521, 4294901760
      %v1545 = vsub.f32 %v521, %v1544
      %v1546 = vand.u32 %v1545, 4294901760
      %1547 = vmatpush1.msra.mxu0 %v1546
      %1548 = vmatprep.subr.mxu0 0.0
      %1549 = vmatpush1.msra.mxu0 0.0
      %1550 = vmatprep.subr.mxu0 0.0
      %1551 = vmatpush1.msra.mxu0 0.0
      %1552 = vmatprep.subr.mxu0 0.0
      %1553 = vmatpush1.msra.mxu0 0.0
      %1554 = vmatprep.subr.mxu0 0.0
      %1555 = vmatpush1.msra.mxu0 0.0
      %1556 = vmatprep.subr.mxu0 0.0
      %1557 = vmatpush1.msra.mxu0 0.0
      %1558 = vmatprep.subr.mxu0 0.0
      %1559 = vmatpush1.msra.mxu0 0.0
      %1560 = vmatprep.subr.mxu0 0.0
      %1561 = vmatpush1.msra.mxu0 0.0
      %1562 = vmatprep.subr.mxu0 0.0
      %1563 = vmatpush1.msra.mxu0 0.0
      %1564 = vmatprep.subr.mxu0 0.0
      %1565 = vmatpush1.msra.mxu0 0.0
      %1566 = vmatprep.subr.mxu0 0.0
      %1567 = vmatpush1.msra.mxu0 0.0
      %1568 = vmatprep.subr.mxu0 0.0
      %1569 = vmatpush1.msra.mxu0 0.0
      %1570 = vmatprep.subr.mxu0 0.0
      %1571 = vmatpush1.msra.mxu0 0.0
      %1572 = vmatprep.subr.mxu0 0.0
      %1573 = vmatpush1.msra.mxu0 0.0
      %1574 = vmatprep.subr.mxu0 0.0
      %1575 = vmatpush1.msra.mxu0 0.0
      %1576 = vmatprep.subr.mxu0 0.0
      %1577 = vmatpush1.msra.mxu0 0.0
      %1578 = vmatprep.subr.mxu0 0.0
      %1579 = vmatpush1.msra.mxu0 0.0
      %1580 = vmatprep.subr.mxu0 0.0
      %1581 = vmatpush1.msra.mxu0 0.0
      %1582 = vmatprep.subr.mxu0 0.0
      %1583 = vmatpush1.msra.mxu0 0.0
      %1584 = vmatprep.subr.mxu0 0.0
      %1585 = vmatpush1.msra.mxu0 0.0
      %1586 = vmatprep.subr.mxu0 0.0
      %1587 = vmatpush1.msra.mxu0 0.0
      %1588 = vmatprep.subr.mxu0 0.0
      %1589 = vmatpush1.msra.mxu0 0.0
      %1590 = vmatprep.subr.mxu0 0.0
      %1591 = vmatpush1.msra.mxu0 0.0
      %1592 = vmatprep.subr.mxu0 0.0
      %1593 = vmatpush1.msra.mxu0 0.0
      %1594 = vmatprep.subr.mxu0 0.0
      %1595 = vmatpush1.msra.mxu0 0.0
      %1596 = vmatprep.mubr.f32.mxu0 0.0
      %v1597 = vand.u32 %v531, 4294901760
      %1598 = vmatmul.mubr.f32.gmra.mrb[0].mxu0 %v1597
      %v1599 = vpop.f32.mrb[0].mxu0
      %v1600 = vadd.f32 %v1361, %v1599
      %v1601 = vpop.f32.mrb[0].mxu0
      %1602 = vmatprep.mubr.f32.mxu0 0.0
      %v1603 = vand.u32 %v534, 4294901760
      %1604 = vmatmul.mubr.f32.gmra.mrb[0].mxu0 %v1603
      %v1605 = vpop.f32.mrb[0].mxu0
      %v1606 = vadd.f32 %v1369, %v1605
      %v1607 = vpop.f32.mrb[0].mxu0
      %1608 = vmatprep.mubr.f32.mxu0 0.0
      %v1609 = vand.u32 %v537, 4294901760
      %1610 = vmatmul.mubr.f32.gmra.mrb[0].mxu0 %v1609
      %v1611 = vpop.f32.mrb[0].mxu0
      %v1612 = vadd.f32 %v1377, %v1611
      %v1613 = vpop.f32.mrb[0].mxu0
      %1614 = vmatprep.mubr.f32.mxu0 0.0
      %v1615 = vand.u32 %v540, 4294901760
      %1616 = vmatmul.mubr.f32.gmra.mrb[0].mxu0 %v1615
      %v1617 = vpop.f32.mrb[0].mxu0
      %v1618 = vadd.f32 %v1385, %v1617
      %v1619 = vpop.f32.mrb[0].mxu0
      %1620 = vmatprep.mubr.f32.mxu0 0.0
      %v1621 = vand.u32 %v543, 4294901760
      %1622 = vmatmul.mubr.f32.gmra.mrb[0].mxu0 %v1621
      %v1623 = vpop.f32.mrb[0].mxu0
      %v1624 = vadd.f32 %v1393, %v1623
      %v1625 = vpop.f32.mrb[0].mxu0
      %1626 = vmatprep.mubr.f32.mxu0 0.0
      %v1627 = vand.u32 %v546, 4294901760
      %1628 = vmatmul.mubr.f32.gmra.mrb[0].mxu0 %v1627
      %v1629 = vpop.f32.mrb[0].mxu0
      %v1630 = vadd.f32 %v1401, %v1629
      %v1631 = vpop.f32.mrb[0].mxu0
      %1632 = vmatprep.mubr.f32.mxu0 0.0
      %v1633 = vand.u32 %v549, 4294901760
      %1634 = vmatmul.mubr.f32.gmra.mrb[0].mxu0 %v1633
      %v1635 = vpop.f32.mrb[0].mxu0
      %v1636 = vadd.f32 %v1409, %v1635
      %v1637 = vpop.f32.mrb[0].mxu0
      %1638 = vmatprep.mubr.f32.mxu0 0.0
      %v1639 = vand.u32 %v552, 4294901760
      %1640 = vmatmul.mubr.f32.gmra.mrb[0].mxu0 %v1639
      %v1641 = vpop.f32.mrb[0].mxu0
      %v1642 = vadd.f32 %v1417, %v1641
      %v1643 = vpop.f32.mrb[0].mxu0
      %1644 = vmatprep.mubr.f32.mxu0 0.0
      %v1645 = vand.u32 %v555, 4294901760
      %1646 = vmatmul.mubr.f32.gmra.mrb[0].mxu0 %v1645
      %v1647 = vpop.f32.mrb[0].mxu0
      %v1648 = vadd.f32 %v1425, %v1647
      %v1649 = vpop.f32.mrb[0].mxu0
      %1650 = vmatprep.mubr.f32.mxu0 0.0
      %v1651 = vand.u32 %v558, 4294901760
      %1652 = vmatmul.mubr.f32.gmra.mrb[0].mxu0 %v1651
      %v1653 = vpop.f32.mrb[0].mxu0
      %v1654 = vadd.f32 %v1433, %v1653
      %v1655 = vpop.f32.mrb[0].mxu0
      %1656 = vmatprep.mubr.f32.mxu0 0.0
      %v1657 = vand.u32 %v561, 4294901760
      %1658 = vmatmul.mubr.f32.gmra.mrb[0].mxu0 %v1657
      %v1659 = vpop.f32.mrb[0].mxu0
      %v1660 = vadd.f32 %v1441, %v1659
      %v1661 = vpop.f32.mrb[0].mxu0
      %1662 = vmatprep.mubr.f32.mxu0 0.0
      %v1663 = vand.u32 %v564, 4294901760
      %1664 = vmatmul.mubr.f32.gmra.mrb[0].mxu0 %v1663
      %v1665 = vpop.f32.mrb[0].mxu0
      %v1666 = vadd.f32 %v1449, %v1665
      %v1667 = vpop.f32.mrb[0].mxu0
      %1668 = vmatprep.mubr.f32.mxu0 0.0
      %v1669 = vand.u32 %v567, 4294901760
      %1670 = vmatmul.mubr.f32.gmra.mrb[0].mxu0 %v1669
      %v1671 = vpop.f32.mrb[0].mxu0
      %v1672 = vadd.f32 %v1457, %v1671
      %v1673 = vpop.f32.mrb[0].mxu0
      %1674 = vmatprep.mubr.f32.mxu0 0.0
      %v1675 = vand.u32 %v570, 4294901760
      %1676 = vmatmul.mubr.f32.gmra.mrb[0].mxu0 %v1675
      %v1677 = vpop.f32.mrb[0].mxu0
      %v1678 = vadd.f32 %v1465, %v1677
      %v1679 = vpop.f32.mrb[0].mxu0
      %1680 = vmatprep.mubr.f32.mxu0 0.0
      %v1681 = vand.u32 %v573, 4294901760
      %1682 = vmatmul.mubr.f32.gmra.mrb[0].mxu0 %v1681
      %v1683 = vpop.f32.mrb[0].mxu0
      %v1684 = vadd.f32 %v1473, %v1683
      %v1685 = vpop.f32.mrb[0].mxu0
      %1686 = vmatprep.mubr.f32.mxu0 0.0
      %v1687 = vand.u32 %v576, 4294901760
      %1688 = vmatmul.mubr.f32.gmra.mrb[0].mxu0 %v1687
      %v1689 = vpop.f32.mrb[0].mxu0
      %v1690 = vadd.f32 %v1481, %v1689
      %v1691 = vpop.f32.mrb[0].mxu0
      %1692 = vmatprep.mubr.f32.mxu0 0.0
      %v1693 = vand.u32 %v579, 4294901760
      %1694 = vmatmul.mubr.f32.gmra.mrb[0].mxu0 %v1693
      %v1695 = vpop.f32.mrb[0].mxu0
      %v1696 = vadd.f32 %v1489, %v1695
      %v1697 = vpop.f32.mrb[0].mxu0
      %1698 = vmatprep.mubr.f32.mxu0 0.0
      %v1699 = vand.u32 %v582, 4294901760
      %1700 = vmatmul.mubr.f32.gmra.mrb[0].mxu0 %v1699
      %v1701 = vpop.f32.mrb[0].mxu0
      %v1702 = vadd.f32 %v1497, %v1701
      %v1703 = vpop.f32.mrb[0].mxu0
      %1704 = vmatprep.mubr.f32.mxu0 0.0
      %v1705 = vand.u32 %v585, 4294901760
      %1706 = vmatmul.mubr.f32.gmra.mrb[0].mxu0 %v1705
      %v1707 = vpop.f32.mrb[0].mxu0
      %v1708 = vadd.f32 %v1505, %v1707
      %v1709 = vpop.f32.mrb[0].mxu0
      %1710 = vdwg.mxu0
      %1711 = vmatprep.subr.mxu0 0.0
      %v1712 = vand.u32 %v514, 4294901760
      %1713 = vmatpush1.msra.mxu0 %v1712
      %1714 = vmatprep.subr.mxu0 0.0
      %v1715 = vand.u32 %v515, 4294901760
      %1716 = vmatpush1.msra.mxu0 %v1715
      %1717 = vmatprep.subr.mxu0 0.0
      %v1718 = vand.u32 %v516, 4294901760
      %1719 = vmatpush1.msra.mxu0 %v1718
      %1720 = vmatprep.subr.mxu0 0.0
      %v1721 = vand.u32 %v517, 4294901760
      %1722 = vmatpush1.msra.mxu0 %v1721
      %1723 = vmatprep.subr.mxu0 0.0
      %v1724 = vand.u32 %v518, 4294901760
      %1725 = vmatpush1.msra.mxu0 %v1724
      %1726 = vmatprep.subr.mxu0 0.0
      %v1727 = vand.u32 %v519, 4294901760
      %1728 = vmatpush1.msra.mxu0 %v1727
      %1729 = vmatprep.subr.mxu0 0.0
      %v1730 = vand.u32 %v520, 4294901760
      %1731 = vmatpush1.msra.mxu0 %v1730
      %1732 = vmatprep.subr.mxu0 0.0
      %v1733 = vand.u32 %v521, 4294901760
      %1734 = vmatpush1.msra.mxu0 %v1733
      %1735 = vmatprep.subr.mxu0 0.0
      %1736 = vmatpush1.msra.mxu0 0.0
      %1737 = vmatprep.subr.mxu0 0.0
      %1738 = vmatpush1.msra.mxu0 0.0
      %1739 = vmatprep.subr.mxu0 0.0
      %1740 = vmatpush1.msra.mxu0 0.0
      %1741 = vmatprep.subr.mxu0 0.0
      %1742 = vmatpush1.msra.mxu0 0.0
      %1743 = vmatprep.subr.mxu0 0.0
      %1744 = vmatpush1.msra.mxu0 0.0
      %1745 = vmatprep.subr.mxu0 0.0
      %1746 = vmatpush1.msra.mxu0 0.0
      %1747 = vmatprep.subr.mxu0 0.0
      %1748 = vmatpush1.msra.mxu0 0.0
      %1749 = vmatprep.subr.mxu0 0.0
      %1750 = vmatpush1.msra.mxu0 0.0
      %1751 = vmatprep.subr.mxu0 0.0
      %1752 = vmatpush1.msra.mxu0 0.0
      %1753 = vmatprep.subr.mxu0 0.0
      %1754 = vmatpush1.msra.mxu0 0.0
      %1755 = vmatprep.subr.mxu0 0.0
      %1756 = vmatpush1.msra.mxu0 0.0
      %1757 = vmatprep.subr.mxu0 0.0
      %1758 = vmatpush1.msra.mxu0 0.0
      %1759 = vmatprep.subr.mxu0 0.0
      %1760 = vmatpush1.msra.mxu0 0.0
      %1761 = vmatprep.subr.mxu0 0.0
      %1762 = vmatpush1.msra.mxu0 0.0
      %1763 = vmatprep.subr.mxu0 0.0
      %1764 = vmatpush1.msra.mxu0 0.0
      %1765 = vmatprep.subr.mxu0 0.0
      %1766 = vmatpush1.msra.mxu0 0.0
      %1767 = vmatprep.subr.mxu0 0.0
      %1768 = vmatpush1.msra.mxu0 0.0
      %1769 = vmatprep.subr.mxu0 0.0
      %1770 = vmatpush1.msra.mxu0 0.0
      %1771 = vmatprep.subr.mxu0 0.0
      %1772 = vmatpush1.msra.mxu0 0.0
      %1773 = vmatprep.subr.mxu0 0.0
      %1774 = vmatpush1.msra.mxu0 0.0
      %1775 = vmatprep.subr.mxu0 0.0
      %1776 = vmatpush1.msra.mxu0 0.0
      %1777 = vmatprep.subr.mxu0 0.0
      %1778 = vmatpush1.msra.mxu0 0.0
      %1779 = vmatprep.subr.mxu0 0.0
      %1780 = vmatpush1.msra.mxu0 0.0
      %1781 = vmatprep.subr.mxu0 0.0
      %1782 = vmatpush1.msra.mxu0 0.0
      %1783 = vmatprep.mubr.f32.mxu0 0.0
      %v1784 = vand.u32 %v531, 4294901760
      %1785 = vmatmul.mubr.f32.gmra.mrb[0].mxu0 %v1784
      %v1786 = vpop.f32.mrb[0].mxu0
      %v1787 = vadd.f32 %v1600, %v1786
      %v1788 = vpop.f32.mrb[0].mxu0
      %1789 = vmatprep.mubr.f32.mxu0 0.0
      %v1790 = vand.u32 %v534, 4294901760
      %1791 = vmatmul.mubr.f32.gmra.mrb[0].mxu0 %v1790
      %v1792 = vpop.f32.mrb[0].mxu0
      %v1793 = vadd.f32 %v1606, %v1792
      %v1794 = vpop.f32.mrb[0].mxu0
      %1795 = vmatprep.mubr.f32.mxu0 0.0
      %v1796 = vand.u32 %v537, 4294901760
      %1797 = vmatmul.mubr.f32.gmra.mrb[0].mxu0 %v1796
      %v1798 = vpop.f32.mrb[0].mxu0
      %v1799 = vadd.f32 %v1612, %v1798
      %v1800 = vpop.f32.mrb[0].mxu0
      %1801 = vmatprep.mubr.f32.mxu0 0.0
      %v1802 = vand.u32 %v540, 4294901760
      %1803 = vmatmul.mubr.f32.gmra.mrb[0].mxu0 %v1802
      %v1804 = vpop.f32.mrb[0].mxu0
      %v1805 = vadd.f32 %v1618, %v1804
      %v1806 = vpop.f32.mrb[0].mxu0
      %1807 = vmatprep.mubr.f32.mxu0 0.0
      %v1808 = vand.u32 %v543, 4294901760
      %1809 = vmatmul.mubr.f32.gmra.mrb[0].mxu0 %v1808
      %v1810 = vpop.f32.mrb[0].mxu0
      %v1811 = vadd.f32 %v1624, %v1810
      %v1812 = vpop.f32.mrb[0].mxu0
      %1813 = vmatprep.mubr.f32.mxu0 0.0
      %v1814 = vand.u32 %v546, 4294901760
      %1815 = vmatmul.mubr.f32.gmra.mrb[0].mxu0 %v1814
      %v1816 = vpop.f32.mrb[0].mxu0
      %v1817 = vadd.f32 %v1630, %v1816
      %v1818 = vpop.f32.mrb[0].mxu0
      %1819 = vmatprep.mubr.f32.mxu0 0.0
      %v1820 = vand.u32 %v549, 4294901760
      %1821 = vmatmul.mubr.f32.gmra.mrb[0].mxu0 %v1820
      %v1822 = vpop.f32.mrb[0].mxu0
      %v1823 = vadd.f32 %v1636, %v1822
      %v1824 = vpop.f32.mrb[0].mxu0
      %1825 = vmatprep.mubr.f32.mxu0 0.0
      %v1826 = vand.u32 %v552, 4294901760
      %1827 = vmatmul.mubr.f32.gmra.mrb[0].mxu0 %v1826
      %v1828 = vpop.f32.mrb[0].mxu0
      %v1829 = vadd.f32 %v1642, %v1828
      %v1830 = vpop.f32.mrb[0].mxu0
      %1831 = vmatprep.mubr.f32.mxu0 0.0
      %v1832 = vand.u32 %v555, 4294901760
      %1833 = vmatmul.mubr.f32.gmra.mrb[0].mxu0 %v1832
      %v1834 = vpop.f32.mrb[0].mxu0
      %v1835 = vadd.f32 %v1648, %v1834
      %v1836 = vpop.f32.mrb[0].mxu0
      %1837 = vmatprep.mubr.f32.mxu0 0.0
      %v1838 = vand.u32 %v558, 4294901760
      %1839 = vmatmul.mubr.f32.gmra.mrb[0].mxu0 %v1838
      %v1840 = vpop.f32.mrb[0].mxu0
      %v1841 = vadd.f32 %v1654, %v1840
      %v1842 = vpop.f32.mrb[0].mxu0
      %1843 = vmatprep.mubr.f32.mxu0 0.0
      %v1844 = vand.u32 %v561, 4294901760
      %1845 = vmatmul.mubr.f32.gmra.mrb[0].mxu0 %v1844
      %v1846 = vpop.f32.mrb[0].mxu0
      %v1847 = vadd.f32 %v1660, %v1846
      %v1848 = vpop.f32.mrb[0].mxu0
      %1849 = vmatprep.mubr.f32.mxu0 0.0
      %v1850 = vand.u32 %v564, 4294901760
      %1851 = vmatmul.mubr.f32.gmra.mrb[0].mxu0 %v1850
      %v1852 = vpop.f32.mrb[0].mxu0
      %v1853 = vadd.f32 %v1666, %v1852
      %v1854 = vpop.f32.mrb[0].mxu0
      %1855 = vmatprep.mubr.f32.mxu0 0.0
      %v1856 = vand.u32 %v567, 4294901760
      %1857 = vmatmul.mubr.f32.gmra.mrb[0].mxu0 %v1856
      %v1858 = vpop.f32.mrb[0].mxu0
      %v1859 = vadd.f32 %v1672, %v1858
      %v1860 = vpop.f32.mrb[0].mxu0
      %1861 = vmatprep.mubr.f32.mxu0 0.0
      %v1862 = vand.u32 %v570, 4294901760
      %1863 = vmatmul.mubr.f32.gmra.mrb[0].mxu0 %v1862
      %v1864 = vpop.f32.mrb[0].mxu0
      %v1865 = vadd.f32 %v1678, %v1864
      %v1866 = vpop.f32.mrb[0].mxu0
      %1867 = vmatprep.mubr.f32.mxu0 0.0
      %v1868 = vand.u32 %v573, 4294901760
      %1869 = vmatmul.mubr.f32.gmra.mrb[0].mxu0 %v1868
      %v1870 = vpop.f32.mrb[0].mxu0
      %v1871 = vadd.f32 %v1684, %v1870
      %v1872 = vpop.f32.mrb[0].mxu0
      %1873 = vmatprep.mubr.f32.mxu0 0.0
      %v1874 = vand.u32 %v576, 4294901760
      %1875 = vmatmul.mubr.f32.gmra.mrb[0].mxu0 %v1874
      %v1876 = vpop.f32.mrb[0].mxu0
      %v1877 = vadd.f32 %v1690, %v1876
      %v1878 = vpop.f32.mrb[0].mxu0
      %1879 = vmatprep.mubr.f32.mxu0 0.0
      %v1880 = vand.u32 %v579, 4294901760
      %1881 = vmatmul.mubr.f32.gmra.mrb[0].mxu0 %v1880
      %v1882 = vpop.f32.mrb[0].mxu0
      %v1883 = vadd.f32 %v1696, %v1882
      %v1884 = vpop.f32.mrb[0].mxu0
      %1885 = vmatprep.mubr.f32.mxu0 0.0
      %v1886 = vand.u32 %v582, 4294901760
      %1887 = vmatmul.mubr.f32.gmra.mrb[0].mxu0 %v1886
      %v1888 = vpop.f32.mrb[0].mxu0
      %v1889 = vadd.f32 %v1702, %v1888
      %v1890 = vpop.f32.mrb[0].mxu0
      %1891 = vmatprep.mubr.f32.mxu0 0.0
      %v1892 = vand.u32 %v585, 4294901760
      %1893 = vmatmul.mubr.f32.gmra.mrb[0].mxu0 %v1892
      %v1894 = vpop.f32.mrb[0].mxu0
      %v1895 = vadd.f32 %v1708, %v1894
      %v1896 = vpop.f32.mrb[0].mxu0
      %1897 = vdwg.mxu0
      %vm1898 = vcmp.gt.f32.partialorder %v1787, 20.0
      %vm1899 = vcmp.gt.f32.partialorder %v1793, 20.0
      %vm1900 = vcmp.gt.f32.partialorder %v1799, 20.0
      %vm1901 = vcmp.gt.f32.partialorder %v1805, 20.0
      %vm1902 = vcmp.gt.f32.partialorder %v1811, 20.0
      %vm1903 = vcmp.gt.f32.partialorder %v1817, 20.0
      %vm1904 = vcmp.gt.f32.partialorder %v1823, 20.0
      %vm1905 = vcmp.gt.f32.partialorder %v1829, 20.0
      %vm1906 = vcmp.gt.f32.partialorder %v1835, 20.0
      %vm1907 = vcmp.gt.f32.partialorder %v1841, 20.0
      %vm1908 = vcmp.gt.f32.partialorder %v1847, 20.0
      %vm1909 = vcmp.gt.f32.partialorder %v1853, 20.0
      %vm1910 = vcmp.gt.f32.partialorder %v1859, 20.0
      %vm1911 = vcmp.gt.f32.partialorder %v1865, 20.0
      %vm1912 = vcmp.gt.f32.partialorder %v1871, 20.0
      %vm1913 = vcmp.gt.f32.partialorder %v1877, 20.0
      %vm1914 = vcmp.gt.f32.partialorder %v1883, 20.0
      %vm1915 = vcmp.gt.f32.partialorder %v1889, 20.0
      %vm1916 = vcmp.gt.f32.partialorder %v1895, 20.0
      %v1917 = vmin.f32 %v1787, 20.0
      %v1918 = vmin.f32 %v1793, 20.0
      %v1919 = vmin.f32 %v1799, 20.0
      %v1920 = vmin.f32 %v1805, 20.0
      %v1921 = vmin.f32 %v1811, 20.0
      %v1922 = vmin.f32 %v1817, 20.0
      %v1923 = vmin.f32 %v1823, 20.0
      %v1924 = vmin.f32 %v1829, 20.0
      %v1925 = vmin.f32 %v1835, 20.0
      %v1926 = vmin.f32 %v1841, 20.0
      %v1927 = vmin.f32 %v1847, 20.0
      %v1928 = vmin.f32 %v1853, 20.0
      %v1929 = vmin.f32 %v1859, 20.0
      %v1930 = vmin.f32 %v1865, 20.0
      %v1931 = vmin.f32 %v1871, 20.0
      %v1932 = vmin.f32 %v1877, 20.0
      %v1933 = vmin.f32 %v1883, 20.0
      %v1934 = vmin.f32 %v1889, 20.0
      %v1935 = vmin.f32 %v1895, 20.0
      %v1936 = vmul.f32 %v1917, 1.442695
      %v1937 = vpow.pop %v1936
      %v1938 = vmul.f32 %v1918, 1.442695
      %v1939 = vpow.pop %v1938
      %v1940 = vmul.f32 %v1919, 1.442695
      %v1941 = vpow.pop %v1940
      %v1942 = vmul.f32 %v1920, 1.442695
      %v1943 = vpow.pop %v1942
      %v1944 = vmul.f32 %v1921, 1.442695
      %v1945 = vpow.pop %v1944
      %v1946 = vmul.f32 %v1922, 1.442695
      %v1947 = vpow.pop %v1946
      %v1948 = vmul.f32 %v1923, 1.442695
      %v1949 = vpow.pop %v1948
      %v1950 = vmul.f32 %v1924, 1.442695
      %v1951 = vpow.pop %v1950
      %v1952 = vmul.f32 %v1925, 1.442695
      %v1953 = vpow.pop %v1952
      %v1954 = vmul.f32 %v1926, 1.442695
      %v1955 = vpow.pop %v1954
      %v1956 = vmul.f32 %v1927, 1.442695
      %v1957 = vpow.pop %v1956
      %v1958 = vmul.f32 %v1928, 1.442695
      %v1959 = vpow.pop %v1958
      %v1960 = vmul.f32 %v1929, 1.442695
      %v1961 = vpow.pop %v1960
      %v1962 = vmul.f32 %v1930, 1.442695
      %v1963 = vpow.pop %v1962
      %v1964 = vmul.f32 %v1931, 1.442695
      %v1965 = vpow.pop %v1964
      %v1966 = vmul.f32 %v1932, 1.442695
      %v1967 = vpow.pop %v1966
      %v1968 = vmul.f32 %v1933, 1.442695
      %v1969 = vpow.pop %v1968
      %v1970 = vmul.f32 %v1934, 1.442695
      %v1971 = vpow.pop %v1970
      %v1972 = vmul.f32 %v1935, 1.442695
      %v1973 = vpow.pop %v1972
      %v1974 = vadd.f32 %v1937, 1.0
      %v1975 = vlog2.pop %v1974
      %v1976 = vmul.f32 %v1975, 0.6931472
      %v1977 = vmul.f32 -0.5, %v1937
      %v1978 = vadd.f32 %v1977, 1.0
      %v1979 = vmul.f32 %v1978, %v1937
      %v1980 = vand.u32 2147483647, %v1937
      %vm1981 = vcmp.lt.f32.partialorder %v1980, 0.0004427343
      %v1982 = vsel %vm1981, %v1979, %v1976
      %v1983 = vadd.f32 %v1939, 1.0
      %v1984 = vlog2.pop %v1983
      %v1985 = vmul.f32 %v1984, 0.6931472
      %v1986 = vmul.f32 -0.5, %v1939
      %v1987 = vadd.f32 %v1986, 1.0
      %v1988 = vmul.f32 %v1987, %v1939
      %v1989 = vand.u32 2147483647, %v1939
      %vm1990 = vcmp.lt.f32.partialorder %v1989, 0.0004427343
      %v1991 = vsel %vm1990, %v1988, %v1985
      %v1992 = vadd.f32 %v1941, 1.0
      %v1993 = vlog2.pop %v1992
      %v1994 = vmul.f32 %v1993, 0.6931472
      %v1995 = vmul.f32 -0.5, %v1941
      %v1996 = vadd.f32 %v1995, 1.0
      %v1997 = vmul.f32 %v1996, %v1941
      %v1998 = vand.u32 2147483647, %v1941
      %vm1999 = vcmp.lt.f32.partialorder %v1998, 0.0004427343
      %v2000 = vsel %vm1999, %v1997, %v1994
      %v2001 = vadd.f32 %v1943, 1.0
      %v2002 = vlog2.pop %v2001
      %v2003 = vmul.f32 %v2002, 0.6931472
      %v2004 = vmul.f32 -0.5, %v1943
      %v2005 = vadd.f32 %v2004, 1.0
      %v2006 = vmul.f32 %v2005, %v1943
      %v2007 = vand.u32 2147483647, %v1943
      %vm2008 = vcmp.lt.f32.partialorder %v2007, 0.0004427343
      %v2009 = vsel %vm2008, %v2006, %v2003
      %v2010 = vadd.f32 %v1945, 1.0
      %v2011 = vlog2.pop %v2010
      %v2012 = vmul.f32 %v2011, 0.6931472
      %v2013 = vmul.f32 -0.5, %v1945
      %v2014 = vadd.f32 %v2013, 1.0
      %v2015 = vmul.f32 %v2014, %v1945
      %v2016 = vand.u32 2147483647, %v1945
      %vm2017 = vcmp.lt.f32.partialorder %v2016, 0.0004427343
      %v2018 = vsel %vm2017, %v2015, %v2012
      %v2019 = vadd.f32 %v1947, 1.0
      %v2020 = vlog2.pop %v2019
      %v2021 = vmul.f32 %v2020, 0.6931472
      %v2022 = vmul.f32 -0.5, %v1947
      %v2023 = vadd.f32 %v2022, 1.0
      %v2024 = vmul.f32 %v2023, %v1947
      %v2025 = vand.u32 2147483647, %v1947
      %vm2026 = vcmp.lt.f32.partialorder %v2025, 0.0004427343
      %v2027 = vsel %vm2026, %v2024, %v2021
      %v2028 = vadd.f32 %v1949, 1.0
      %v2029 = vlog2.pop %v2028
      %v2030 = vmul.f32 %v2029, 0.6931472
      %v2031 = vmul.f32 -0.5, %v1949
      %v2032 = vadd.f32 %v2031, 1.0
      %v2033 = vmul.f32 %v2032, %v1949
      %v2034 = vand.u32 2147483647, %v1949
      %vm2035 = vcmp.lt.f32.partialorder %v2034, 0.0004427343
      %v2036 = vsel %vm2035, %v2033, %v2030
      %v2037 = vadd.f32 %v1951, 1.0
      %v2038 = vlog2.pop %v2037
      %v2039 = vmul.f32 %v2038, 0.6931472
      %v2040 = vmul.f32 -0.5, %v1951
      %v2041 = vadd.f32 %v2040, 1.0
      %v2042 = vmul.f32 %v2041, %v1951
      %v2043 = vand.u32 2147483647, %v1951
      %vm2044 = vcmp.lt.f32.partialorder %v2043, 0.0004427343
      %v2045 = vsel %vm2044, %v2042, %v2039
      %v2046 = vadd.f32 %v1953, 1.0
      %v2047 = vlog2.pop %v2046
      %v2048 = vmul.f32 %v2047, 0.6931472
      %v2049 = vmul.f32 -0.5, %v1953
      %v2050 = vadd.f32 %v2049, 1.0
      %v2051 = vmul.f32 %v2050, %v1953
      %v2052 = vand.u32 2147483647, %v1953
      %vm2053 = vcmp.lt.f32.partialorder %v2052, 0.0004427343
      %v2054 = vsel %vm2053, %v2051, %v2048
      %v2055 = vadd.f32 %v1955, 1.0
      %v2056 = vlog2.pop %v2055
      %v2057 = vmul.f32 %v2056, 0.6931472
      %v2058 = vmul.f32 -0.5, %v1955
      %v2059 = vadd.f32 %v2058, 1.0
      %v2060 = vmul.f32 %v2059, %v1955
      %v2061 = vand.u32 2147483647, %v1955
      %vm2062 = vcmp.lt.f32.partialorder %v2061, 0.0004427343
      %v2063 = vsel %vm2062, %v2060, %v2057
      %v2064 = vadd.f32 %v1957, 1.0
      %v2065 = vlog2.pop %v2064
      %v2066 = vmul.f32 %v2065, 0.6931472
      %v2067 = vmul.f32 -0.5, %v1957
      %v2068 = vadd.f32 %v2067, 1.0
      %v2069 = vmul.f32 %v2068, %v1957
      %v2070 = vand.u32 2147483647, %v1957
      %vm2071 = vcmp.lt.f32.partialorder %v2070, 0.0004427343
      %v2072 = vsel %vm2071, %v2069, %v2066
      %v2073 = vadd.f32 %v1959, 1.0
      %v2074 = vlog2.pop %v2073
      %v2075 = vmul.f32 %v2074, 0.6931472
      %v2076 = vmul.f32 -0.5, %v1959
      %v2077 = vadd.f32 %v2076, 1.0
      %v2078 = vmul.f32 %v2077, %v1959
      %v2079 = vand.u32 2147483647, %v1959
      %vm2080 = vcmp.lt.f32.partialorder %v2079, 0.0004427343
      %v2081 = vsel %vm2080, %v2078, %v2075
      %v2082 = vadd.f32 %v1961, 1.0
      %v2083 = vlog2.pop %v2082
      %v2084 = vmul.f32 %v2083, 0.6931472
      %v2085 = vmul.f32 -0.5, %v1961
      %v2086 = vadd.f32 %v2085, 1.0
      %v2087 = vmul.f32 %v2086, %v1961
      %v2088 = vand.u32 2147483647, %v1961
      %vm2089 = vcmp.lt.f32.partialorder %v2088, 0.0004427343
      %v2090 = vsel %vm2089, %v2087, %v2084
      %v2091 = vadd.f32 %v1963, 1.0
      %v2092 = vlog2.pop %v2091
      %v2093 = vmul.f32 %v2092, 0.6931472
      %v2094 = vmul.f32 -0.5, %v1963
      %v2095 = vadd.f32 %v2094, 1.0
      %v2096 = vmul.f32 %v2095, %v1963
      %v2097 = vand.u32 2147483647, %v1963
      %vm2098 = vcmp.lt.f32.partialorder %v2097, 0.0004427343
      %v2099 = vsel %vm2098, %v2096, %v2093
      %v2100 = vadd.f32 %v1965, 1.0
      %v2101 = vlog2.pop %v2100
      %v2102 = vmul.f32 %v2101, 0.6931472
      %v2103 = vmul.f32 -0.5, %v1965
      %v2104 = vadd.f32 %v2103, 1.0
      %v2105 = vmul.f32 %v2104, %v1965
      %v2106 = vand.u32 2147483647, %v1965
      %vm2107 = vcmp.lt.f32.partialorder %v2106, 0.0004427343
      %v2108 = vsel %vm2107, %v2105, %v2102
      %v2109 = vadd.f32 %v1967, 1.0
      %v2110 = vlog2.pop %v2109
      %v2111 = vmul.f32 %v2110, 0.6931472
      %v2112 = vmul.f32 -0.5, %v1967
      %v2113 = vadd.f32 %v2112, 1.0
      %v2114 = vmul.f32 %v2113, %v1967
      %v2115 = vand.u32 2147483647, %v1967
      %vm2116 = vcmp.lt.f32.partialorder %v2115, 0.0004427343
      %v2117 = vsel %vm2116, %v2114, %v2111
      %v2118 = vadd.f32 %v1969, 1.0
      %v2119 = vlog2.pop %v2118
      %v2120 = vmul.f32 %v2119, 0.6931472
      %v2121 = vmul.f32 -0.5, %v1969
      %v2122 = vadd.f32 %v2121, 1.0
      %v2123 = vmul.f32 %v2122, %v1969
      %v2124 = vand.u32 2147483647, %v1969
      %vm2125 = vcmp.lt.f32.partialorder %v2124, 0.0004427343
      %v2126 = vsel %vm2125, %v2123, %v2120
      %v2127 = vadd.f32 %v1971, 1.0
      %v2128 = vlog2.pop %v2127
      %v2129 = vmul.f32 %v2128, 0.6931472
      %v2130 = vmul.f32 -0.5, %v1971
      %v2131 = vadd.f32 %v2130, 1.0
      %v2132 = vmul.f32 %v2131, %v1971
      %v2133 = vand.u32 2147483647, %v1971
      %vm2134 = vcmp.lt.f32.partialorder %v2133, 0.0004427343
      %v2135 = vsel %vm2134, %v2132, %v2129
      %v2136 = vadd.f32 %v1973, 1.0
      %v2137 = vlog2.pop %v2136
      %v2138 = vmul.f32 %v2137, 0.6931472
      %v2139 = vmul.f32 -0.5, %v1973
      %v2140 = vadd.f32 %v2139, 1.0
      %v2141 = vmul.f32 %v2140, %v1973
      %v2142 = vand.u32 2147483647, %v1973
      %vm2143 = vcmp.lt.f32.partialorder %v2142, 0.0004427343
      %v2144 = vsel %vm2143, %v2141, %v2138
      %v2145 = vsel %vm1898, %v1787, %v1982
      %v2146 = vsel %vm1899, %v1793, %v1991
      %v2147 = vsel %vm1900, %v1799, %v2000
      %v2148 = vsel %vm1901, %v1805, %v2009
      %v2149 = vsel %vm1902, %v1811, %v2018
      %v2150 = vsel %vm1903, %v1817, %v2027
      %v2151 = vsel %vm1904, %v1823, %v2036
      %v2152 = vsel %vm1905, %v1829, %v2045
      %v2153 = vsel %vm1906, %v1835, %v2054
      %v2154 = vsel %vm1907, %v1841, %v2063
      %v2155 = vsel %vm1908, %v1847, %v2072
      %v2156 = vsel %vm1909, %v1853, %v2081
      %v2157 = vsel %vm1910, %v1859, %v2090
      %v2158 = vsel %vm1911, %v1865, %v2099
      %v2159 = vsel %vm1912, %v1871, %v2108
      %v2160 = vsel %vm1913, %v1877, %v2117
      %v2161 = vsel %vm1914, %v1883, %v2126
      %v2162 = vsel %vm1915, %v1889, %v2135
      %v2163 = vsel %vm1916, %v1895, %v2144
      %v2164 = vld [vmem:[%s3] sm:$0x1]
      %v2166 = vlaneseq
      %v2167 = vshrl.u32 %v2166, 7
      %v2168 = vsub.s32 0, %v2167
      %v2169 = vrot.slane %v2164, %v2168
      %v2171 = vmul.f32 %v2145, %v2169
      %v2172 = vmul.f32 %v2146, %v2169
      %v2173 = vmul.f32 %v2147, %v2169
      %v2174 = vmul.f32 %v2148, %v2169
      %v2175 = vmul.f32 %v2149, %v2169
      %v2176 = vmul.f32 %v2150, %v2169
      %v2177 = vmul.f32 %v2151, %v2169
      %v2178 = vmul.f32 %v2152, %v2169
      %v2179 = vmul.f32 %v2153, %v2169
      %v2180 = vmul.f32 %v2154, %v2169
      %v2181 = vmul.f32 %v2155, %v2169
      %v2182 = vmul.f32 %v2156, %v2169
      %v2183 = vmul.f32 %v2157, %v2169
      %v2184 = vmul.f32 %v2158, %v2169
      %v2185 = vmul.f32 %v2159, %v2169
      %v2186 = vmul.f32 %v2160, %v2169
      %v2187 = vmul.f32 %v2161, %v2169
      %v2188 = vmul.f32 %v2162, %v2169
      %v2189 = vmul.f32 %v2163, %v2169
      %2190 = vadd.xlane.f32.xlu0 %v2171
      %v2191 = vpop.xlane.xlu0 %2190
      %2192 = vadd.xlane.f32.xlu0 %v2172
      %v2193 = vpop.xlane.xlu0 %2192
      %2194 = vadd.xlane.f32.xlu0 %v2173
      %v2195 = vpop.xlane.xlu0 %2194
      %2196 = vadd.xlane.f32.xlu0 %v2174
      %v2197 = vpop.xlane.xlu0 %2196
      %2198 = vadd.xlane.f32.xlu0 %v2175
      %v2199 = vpop.xlane.xlu0 %2198
      %2200 = vadd.xlane.f32.xlu0 %v2176
      %v2201 = vpop.xlane.xlu0 %2200
      %2202 = vadd.xlane.f32.xlu0 %v2177
      %v2203 = vpop.xlane.xlu0 %2202
      %2204 = vadd.xlane.f32.xlu0 %v2178
      %v2205 = vpop.xlane.xlu0 %2204
      %2206 = vadd.xlane.f32.xlu0 %v2179
      %v2207 = vpop.xlane.xlu0 %2206
      %2208 = vadd.xlane.f32.xlu0 %v2180
      %v2209 = vpop.xlane.xlu0 %2208
      %2210 = vadd.xlane.f32.xlu0 %v2181
      %v2211 = vpop.xlane.xlu0 %2210
      %2212 = vadd.xlane.f32.xlu0 %v2182
      %v2213 = vpop.xlane.xlu0 %2212
      %2214 = vadd.xlane.f32.xlu0 %v2183
      %v2215 = vpop.xlane.xlu0 %2214
      %2216 = vadd.xlane.f32.xlu0 %v2184
      %v2217 = vpop.xlane.xlu0 %2216
      %2218 = vadd.xlane.f32.xlu0 %v2185
      %v2219 = vpop.xlane.xlu0 %2218
      %2220 = vadd.xlane.f32.xlu0 %v2186
      %v2221 = vpop.xlane.xlu0 %2220
      %2222 = vadd.xlane.f32.xlu0 %v2187
      %v2223 = vpop.xlane.xlu0 %2222
      %2224 = vadd.xlane.f32.xlu0 %v2188
      %v2225 = vpop.xlane.xlu0 %2224
      %2226 = vadd.xlane.f32.xlu0 %v2189
      %v2227 = vpop.xlane.xlu0 %2226
      %s2228 = sld [smem:[#allocation2]]
      %v2229 = vstv %s2228
      %v2230 = vadd.f32 %v2191, %v2229
      %v2231 = vadd.f32 %v2193, %v2229
      %v2232 = vadd.f32 %v2195, %v2229
      %v2233 = vadd.f32 %v2197, %v2229
      %v2234 = vadd.f32 %v2199, %v2229
      %v2235 = vadd.f32 %v2201, %v2229
      %v2236 = vadd.f32 %v2203, %v2229
      %v2237 = vadd.f32 %v2205, %v2229
      %v2238 = vadd.f32 %v2207, %v2229
      %v2239 = vadd.f32 %v2209, %v2229
      %v2240 = vadd.f32 %v2211, %v2229
      %v2241 = vadd.f32 %v2213, %v2229
      %v2242 = vadd.f32 %v2215, %v2229
      %v2243 = vadd.f32 %v2217, %v2229
      %v2244 = vadd.f32 %v2219, %v2229
      %v2245 = vadd.f32 %v2221, %v2229
      %v2246 = vadd.f32 %v2223, %v2229
      %v2247 = vadd.f32 %v2225, %v2229
      %v2248 = vadd.f32 %v2227, %v2229
      %vm2249 = vcmask 7168
      %2250 = vst.msk [vmem:[%s227] sm:$0xff] %vm2249, %v2230
      %2251 = vst.msk [vmem:[%s227 + $0x8] sm:$0xff] %vm2249, %v2231
      %2252 = vst.msk [vmem:[%s227 + $0x10] sm:$0xff] %vm2249, %v2232
      %2253 = vst.msk [vmem:[%s227 + $0x18] sm:$0xff] %vm2249, %v2233
      %2254 = vst.msk [vmem:[%s227 + $0x20] sm:$0xff] %vm2249, %v2234
      %2255 = vst.msk [vmem:[%s227 + $0x28] sm:$0xff] %vm2249, %v2235
      %2256 = vst.msk [vmem:[%s227 + $0x30] sm:$0xff] %vm2249, %v2236
      %2257 = vst.msk [vmem:[%s227 + $0x38] sm:$0xff] %vm2249, %v2237
      %2258 = vst.msk [vmem:[%s227 + $0x40] sm:$0xff] %vm2249, %v2238
      %2259 = vst.msk [vmem:[%s227 + $0x48] sm:$0xff] %vm2249, %v2239
      %2260 = vst.msk [vmem:[%s227 + $0x50] sm:$0xff] %vm2249, %v2240
      %2261 = vst.msk [vmem:[%s227 + $0x58] sm:$0xff] %vm2249, %v2241
      %2262 = vst.msk [vmem:[%s227 + $0x60] sm:$0xff] %vm2249, %v2242
      %2263 = vst.msk [vmem:[%s227 + $0x68] sm:$0xff] %vm2249, %v2243
      %2264 = vst.msk [vmem:[%s227 + $0x70] sm:$0xff] %vm2249, %v2244
      %2265 = vst.msk [vmem:[%s227 + $0x78] sm:$0xff] %vm2249, %v2245
      %2266 = vst.msk [vmem:[%s227 + $0x80] sm:$0xff] %vm2249, %v2246
      %2267 = vst.msk [vmem:[%s227 + $0x88] sm:$0xff] %vm2249, %v2247
      %2268 = vst.msk [vmem:[%s227 + $0x90] sm:$0xff] %vm2249, %v2248
      %s2269 = smul.u32 19, %s17
      %p2270 = scmp.lt.s32.totalorder %s2269, 37
      %s2271 = scalar_select %p2270, %s2269, 37
      %s2272 = smul.addr %s2271, 8
      %s2273 = scalar_lea.vmem %s5, %s2272
      // Predicated region
      $region41: #{tpu_custom_call.1} parent=39 // pred_check
        %p2274 = pneg %p145
      $region42: #{tpu_custom_call.1} parent=39 // pred_check_branch
        %2276 = sbr.rel (%p2274) target = $region44
      $region43: #{tpu_custom_call.1} parent=39 // pred_region
        %s2277 = smul.u32 19, %s17
      $region44: #{tpu_custom_call.1} parent=39 // pred_fallthru
        _
    $region40: #{tpu_custom_call.1} parent=5 // pred_fallthru
      _
    %p2278 = scmp.le.s32.totalorder 2, %s12
    // Predicated region
    $region45: #{tpu_custom_call.1} parent=5 // pred_check
      %p2279 = pneg %p2278
    $region46: #{tpu_custom_call.1} parent=5 // pred_check_branch
      %2281 = sbr.rel (%p2279) target = $region48
    $region47: #{tpu_custom_call.1} parent=5 // pred_region
      %s2282 = ssub.s32 %s12, 2
      // Predicated region
      $region49: #{tpu_custom_call.1} parent=47 // pred_check
        %p2283 = pneg %p151
      $region50: #{tpu_custom_call.1} parent=47 // pred_check_branch
        %2285 = sbr.rel (%p2283) target = $region52
      $region51: #{tpu_custom_call.1} parent=47 // pred_region
        %s2286 = smul.u32 19, %s18
        %p2287 = scmp.lt.s32.totalorder %s2286, 37
        %s2288 = scalar_select %p2287, %s2286, 37
        %s2289 = smul.addr %s2288, 8
        %s2290 = scalar_lea.vmem %s5, %s2289
      $region52: #{tpu_custom_call.1} parent=47 // pred_fallthru
        _
    $region48: #{tpu_custom_call.1} parent=5 // pred_fallthru
      _
  $region6: #{tpu_custom_call.1} parent=0 // loop_footer
    %s16 = sadd.s32 1, %s12
  $region7: #{tpu_custom_call.1} parent=0 // loop_footer_branch
    %11 = sbr.rel target = $region3
  $region8: #{tpu_custom_call.1} parent=0 // loop_exit
    _

</llo_original>
